<compile_context>
chip_gen: v6e
topology: v6e:2x2x1
jax: 0.10.0
libtpu: 0.0.40
codegen_flags: <defaults>
</compile_context>

<pallas_src>
import math
from functools import partial

import jax
import jax.numpy as jnp
from jax import lax
from jax.experimental import pallas as pl
from jax.experimental.pallas import tpu as pltpu


# --------------------------------------------------------------------------
# Kernel: one (batch element, Sq tile) per grid step.  All heads per step.
# --------------------------------------------------------------------------
def mha_kernel(q_ref, k_ref, v_ref,
               wq_ref, bq_ref, wk_ref, bk_ref, wv_ref, bv_ref,
               wo_ref, bo_ref,
               o_ref, *, num_heads, dim_q, dim_k, matmul_dtype, exact_softmax):
    xq = q_ref[0]                      # (TQ, Din) f32
    xk = k_ref[0]                      # (Sk, Din)
    xv = v_ref[0]                      # (Sk, Din)

    def mm(a, b):                      # MXU matmul, f32 accumulation
        return jnp.dot(a.astype(matmul_dtype), b.astype(matmul_dtype),
                       preferred_element_type=jnp.float32)

    # Fused projections: one dense matmul per activation (all heads at once).
    # 1/sqrt(dim_q) folded into Q (cheaper than scaling every (TQ, Sk) score tile).
    scale = 1.0 / math.sqrt(dim_q)
    q_all = (mm(xq, wq_ref[...]) + bq_ref[...]) * scale    # (TQ, H*dq)
    k_all = mm(xk, wk_ref[...]) + bk_ref[...]              # (Sk, H*dk)
    v_all = mm(xv, wv_ref[...]) + bv_ref[...]              # (Sk, H*dk)

    # Per-head attention (static loop; H is a compile-time constant).
    ctx_parts = []
    for h in range(num_heads):
        qh = q_all[:, h * dim_q:(h + 1) * dim_q]           # (TQ, dq)
        kh = k_all[:, h * dim_k:(h + 1) * dim_k]           # (Sk, dk)
        vh = v_all[:, h * dim_k:(h + 1) * dim_k]           # (Sk, dk)

        # scores = q_h @ k_h^T ; transpose folded into the contraction.
        s = lax.dot_general(qh.astype(matmul_dtype), kh.astype(matmul_dtype),
                            dimension_numbers=(((1,), (1,)), ((), ())),
                            preferred_element_type=jnp.float32)   # (TQ, Sk)

        # Numerically-stable softmax in f32.
        s = s - jnp.max(s, axis=-1, keepdims=True)
        p = jnp.exp(s)
        denom = jnp.sum(p, axis=-1, keepdims=True)
        if exact_softmax:
            p = p / denom
        else:
            p = p * pl.reciprocal(denom, approx=True)       # EUP slot

        ctx_parts.append(mm(p, vh))                         # (TQ, dk)

    # Pack contexts along the lane axis -> single fused output projection.
    ctx = jnp.concatenate(ctx_parts, axis=-1)               # (TQ, H*dk)
    o_ref[0] = (mm(ctx, wo_ref[...]) + bo_ref[...]).astype(o_ref.dtype)


# --------------------------------------------------------------------------
# Wrapper
# --------------------------------------------------------------------------
def _pick_q_tile(seq_q):
    for t in (512, 256, 128):
        if seq_q % t == 0:
            return t
    return seq_q


def multi_head_attention(query, key, value, params, *,
                         matmul_dtype=jnp.bfloat16,
                         exact_softmax=False,
                         q_tile=None,
                         vmem_limit_bytes=None):
    """query: (B, Sq, Din); key/value: (B, Sk, Din); params: stacked per-head weights."""
    B, Sq, Din = query.shape
    _, Sk, _ = key.shape
    H, _, dq = params["wq"].shape
    dk = params["wk"].shape[-1]
    assert dq == dk, "q @ k^T requires dim_q == dim_k (as in the PyTorch module)"

    tq = q_tile if q_tile is not None else _pick_q_tile(Sq)
    assert Sq % tq == 0
    n_q_tiles = Sq // tq

    # Wrapper-side layout plumbing: pack per-head weights into fused slabs.
    wq = jnp.transpose(params["wq"], (1, 0, 2)).reshape(Din, H * dq)  # (Din, H*dq)
    bq = params["bq"].reshape(1, H * dq)
    wk = jnp.transpose(params["wk"], (1, 0, 2)).reshape(Din, H * dk)
    bk = params["bk"].reshape(1, H * dk)
    wv = jnp.transpose(params["wv"], (1, 0, 2)).reshape(Din, H * dk)
    bv = params["bv"].reshape(1, H * dk)
    wo = params["wo"].reshape(H * dk, Din)                            # (H*dk, Din)
    bo = params["bo"].reshape(1, Din)

    def full_spec(shape):              # small weight blocks: fully resident, no re-DMA
        return pl.BlockSpec(shape, lambda b, qi: (0,) * len(shape))

    in_specs = [
        pl.BlockSpec((1, tq, Din), lambda b, qi: (b, qi, 0)),          # query tile
        pl.BlockSpec((1, Sk, Din), lambda b, qi: (b, 0, 0)),           # key (full Sk)
        pl.BlockSpec((1, Sk, Din), lambda b, qi: (b, 0, 0)),           # value (full Sk)
        full_spec((Din, H * dq)), full_spec((1, H * dq)),              # wq, bq
        full_spec((Din, H * dk)), full_spec((1, H * dk)),              # wk, bk
        full_spec((Din, H * dk)), full_spec((1, H * dk)),              # wv, bv
        full_spec((H * dk, Din)), full_spec((1, Din)),                 # wo, bo
    ]

    kernel = partial(mha_kernel, num_heads=H, dim_q=dq, dim_k=dk,
                     matmul_dtype=matmul_dtype, exact_softmax=exact_softmax)

    return pl.pallas_call(
        kernel,
        out_shape=jax.ShapeDtypeStruct((B, Sq, Din), query.dtype),
        grid=(B, n_q_tiles),
        in_specs=in_specs,
        out_specs=pl.BlockSpec((1, tq, Din), lambda b, qi: (b, qi, 0)),
        compiler_params=pltpu.CompilerParams(
            dimension_semantics=("parallel", "parallel"),
            vmem_limit_bytes=vmem_limit_bytes),
    )(query, key, value, wq, bq, wk, bk, wv, bv, wo, bo)


# --------------------------------------------------------------------------
# Parameter init (mirrors nn.Linear's +/- 1/sqrt(fan_in) uniform init), with
# per-head weights stacked along a leading head axis, (in, out) layout.
# --------------------------------------------------------------------------
def init_mha_params(key, num_heads, dim_in, dim_q, dim_k):
    ks = jax.random.split(key, 8)

    def unif(k, shape, fan_in):
        bound = 1.0 / math.sqrt(fan_in)
        return jax.random.uniform(k, shape, jnp.float32, -bound, bound)

    return dict(
        wq=unif(ks[0], (num_heads, dim_in, dim_q), dim_in),
        bq=unif(ks[1], (num_heads, 1, dim_q), dim_in),
        wk=unif(ks[2], (num_heads, dim_in, dim_k), dim_in),
        bk=unif(ks[3], (num_heads, 1, dim_k), dim_in),
        wv=unif(ks[4], (num_heads, dim_in, dim_k), dim_in),
        bv=unif(ks[5], (num_heads, 1, dim_k), dim_in),
        wo=unif(ks[6], (num_heads, dim_k, dim_in), num_heads * dim_k),
        bo=unif(ks[7], (1, dim_in), num_heads * dim_k),
    )


# Pure-JAX reference (matches the PyTorch module forward).
def mha_reference(query, key, value, params):
    q = jnp.einsum("bsd,hde->bhse", query, params["wq"]) + params["bq"][None]
    k = jnp.einsum("bsd,hde->bhse", key, params["wk"]) + params["bk"][None]
    v = jnp.einsum("bsd,hde->bhse", value, params["wv"]) + params["bv"][None]
    scale = 1.0 / math.sqrt(q.shape[-1])
    s = jnp.einsum("bhqe,bhke->bhqk", q, k) * scale
    p = jax.nn.softmax(s, axis=-1)
    ctx = jnp.einsum("bhqk,bhke->bhqe", p, v)
    return jnp.einsum("bhqe,heo->bqo", ctx, params["wo"]) + params["bo"]


# --------------------------------------------------------------------------
if __name__ == "__main__":
    B, Sq, Sk = 2, 8, 8
    dim_in, num_heads, dim_q, dim_k = 32, 4, 8, 8

    root = jax.random.PRNGKey(0)
    kq, kk, kv, kp = jax.random.split(root, 4)
    query = jax.random.normal(kq, (B, Sq, dim_in), jnp.float32)
    key_in = jax.random.normal(kk, (B, Sk, dim_in), jnp.float32)
    value = jax.random.normal(kv, (B, Sk, dim_in), jnp.float32)
    params = init_mha_params(kp, num_heads, dim_in, dim_q, dim_k)

    out = multi_head_attention(query, key_in, value, params,
                               matmul_dtype=jnp.bfloat16)
    jax.block_until_ready(out)

    assert out.shape == (B, Sq, dim_in) and out.dtype == jnp.float32

    # Loose tolerance: bf16 MXU operands + approximate EUP reciprocal vs f32 reference.
    ref = mha_reference(query, key_in, value, params)
    max_err = float(jnp.max(jnp.abs(out - ref)))
    assert max_err < 5e-2, f"mismatch vs reference: {max_err}"

    print("KERNEL_OK")
</pallas_src>

<mosaic_0001>
module attributes {stable_mosaic.version = 11 : i64} {
  func.func @mha_kernel(%arg0: i32, %arg1: i32, %arg2: memref<1x8x32xf32, #tpu.memory_space<vmem>>, %arg3: memref<1x8x32xf32, #tpu.memory_space<vmem>>, %arg4: memref<1x8x32xf32, #tpu.memory_space<vmem>>, %arg5: memref<32x32xf32, #tpu.memory_space<vmem>>, %arg6: memref<1x32xf32, #tpu.memory_space<vmem>>, %arg7: memref<32x32xf32, #tpu.memory_space<vmem>>, %arg8: memref<1x32xf32, #tpu.memory_space<vmem>>, %arg9: memref<32x32xf32, #tpu.memory_space<vmem>>, %arg10: memref<1x32xf32, #tpu.memory_space<vmem>>, %arg11: memref<32x32xf32, #tpu.memory_space<vmem>>, %arg12: memref<1x32xf32, #tpu.memory_space<vmem>>, %arg13: memref<1x8x32xf32, #tpu.memory_space<vmem>>) attributes {dimension_semantics = [#tpu.dimension_semantics<parallel>, #tpu.dimension_semantics<parallel>], iteration_bounds = array<i64: 2, 1>, scalar_prefetch = 0 : i64, scratch_operands = 0 : i64, tpu.core_type = #tpu.core_type<tc>, window_params = [{transform_indices = @transform_0, window_bounds = array<i64: 1, 8, 32>}, {transform_indices = @transform_1, window_bounds = array<i64: 1, 8, 32>}, {transform_indices = @transform_2, window_bounds = array<i64: 1, 8, 32>}, {pipeline_mode = #tpu.pipeline_mode<synchronous>, transform_indices = @transform_3, window_bounds = array<i64: 32, 32>}, {pipeline_mode = #tpu.pipeline_mode<synchronous>, transform_indices = @transform_4, window_bounds = array<i64: 1, 32>}, {pipeline_mode = #tpu.pipeline_mode<synchronous>, transform_indices = @transform_5, window_bounds = array<i64: 32, 32>}, {pipeline_mode = #tpu.pipeline_mode<synchronous>, transform_indices = @transform_6, window_bounds = array<i64: 1, 32>}, {pipeline_mode = #tpu.pipeline_mode<synchronous>, transform_indices = @transform_7, window_bounds = array<i64: 32, 32>}, {pipeline_mode = #tpu.pipeline_mode<synchronous>, transform_indices = @transform_8, window_bounds = array<i64: 1, 32>}, {pipeline_mode = #tpu.pipeline_mode<synchronous>, transform_indices = @transform_9, window_bounds = array<i64: 32, 32>}, {pipeline_mode = #tpu.pipeline_mode<synchronous>, transform_indices = @transform_10, window_bounds = array<i64: 1, 32>}, {transform_indices = @transform_11, window_bounds = array<i64: 1, 8, 32>}]} {
    %c0 = arith.constant 0 : index
    %c0_0 = arith.constant 0 : index
    %c0_1 = arith.constant 0 : index
    %0 = vector.load %arg2[%c0, %c0_0, %c0_1] : memref<1x8x32xf32, #tpu.memory_space<vmem>>, vector<1x8x32xf32>
    %1 = vector.shape_cast %0 : vector<1x8x32xf32> to vector<8x32xf32>
    %c0_2 = arith.constant 0 : index
    %c0_3 = arith.constant 0 : index
    %c0_4 = arith.constant 0 : index
    %2 = vector.load %arg3[%c0_2, %c0_3, %c0_4] : memref<1x8x32xf32, #tpu.memory_space<vmem>>, vector<1x8x32xf32>
    %3 = vector.shape_cast %2 : vector<1x8x32xf32> to vector<8x32xf32>
    %c0_5 = arith.constant 0 : index
    %c0_6 = arith.constant 0 : index
    %c0_7 = arith.constant 0 : index
    %4 = vector.load %arg4[%c0_5, %c0_6, %c0_7] : memref<1x8x32xf32, #tpu.memory_space<vmem>>, vector<1x8x32xf32>
    %5 = vector.shape_cast %4 : vector<1x8x32xf32> to vector<8x32xf32>
    %c0_8 = arith.constant 0 : index
    %c0_9 = arith.constant 0 : index
    %6 = vector.load %arg5[%c0_8, %c0_9] : memref<32x32xf32, #tpu.memory_space<vmem>>, vector<32x32xf32>
    %7 = arith.truncf %1 : vector<8x32xf32> to vector<8x32xbf16>
    %8 = arith.truncf %6 : vector<32x32xf32> to vector<32x32xbf16>
    %cst = arith.constant dense<0.000000e+00> : vector<8x32xf32>
    %9 = tpu.matmul %7, %8, %cst {dimension_numbers = #tpu.dot_dimension_numbers<[1], [0], [0], [1], [0, 0, 1, 1], [], []>} : vector<8x32xbf16>, vector<32x32xbf16>, vector<8x32xf32> -> vector<8x32xf32>
    %c0_10 = arith.constant 0 : index
    %c0_11 = arith.constant 0 : index
    %10 = vector.load %arg6[%c0_10, %c0_11] : memref<1x32xf32, #tpu.memory_space<vmem>>, vector<1x32xf32>
    %11 = vector.broadcast %10 : vector<1x32xf32> to vector<8x32xf32>
    %12 = arith.addf %9, %11 : vector<8x32xf32>
    %cst_12 = arith.constant 0.353553385 : f32
    %13 = vector.broadcast %cst_12 : f32 to vector<8x32xf32>
    %14 = arith.mulf %12, %13 : vector<8x32xf32>
    %c0_13 = arith.constant 0 : index
    %c0_14 = arith.constant 0 : index
    %15 = vector.load %arg7[%c0_13, %c0_14] : memref<32x32xf32, #tpu.memory_space<vmem>>, vector<32x32xf32>
    %16 = arith.truncf %3 : vector<8x32xf32> to vector<8x32xbf16>
    %17 = arith.truncf %15 : vector<32x32xf32> to vector<32x32xbf16>
    %cst_15 = arith.constant dense<0.000000e+00> : vector<8x32xf32>
    %18 = tpu.matmul %16, %17, %cst_15 {dimension_numbers = #tpu.dot_dimension_numbers<[1], [0], [0], [1], [0, 0, 1, 1], [], []>} : vector<8x32xbf16>, vector<32x32xbf16>, vector<8x32xf32> -> vector<8x32xf32>
    %c0_16 = arith.constant 0 : index
    %c0_17 = arith.constant 0 : index
    %19 = vector.load %arg8[%c0_16, %c0_17] : memref<1x32xf32, #tpu.memory_space<vmem>>, vector<1x32xf32>
    %20 = vector.broadcast %19 : vector<1x32xf32> to vector<8x32xf32>
    %21 = arith.addf %18, %20 : vector<8x32xf32>
    %c0_18 = arith.constant 0 : index
    %c0_19 = arith.constant 0 : index
    %22 = vector.load %arg9[%c0_18, %c0_19] : memref<32x32xf32, #tpu.memory_space<vmem>>, vector<32x32xf32>
    %23 = arith.truncf %5 : vector<8x32xf32> to vector<8x32xbf16>
    %24 = arith.truncf %22 : vector<32x32xf32> to vector<32x32xbf16>
    %cst_20 = arith.constant dense<0.000000e+00> : vector<8x32xf32>
    %25 = tpu.matmul %23, %24, %cst_20 {dimension_numbers = #tpu.dot_dimension_numbers<[1], [0], [0], [1], [0, 0, 1, 1], [], []>} : vector<8x32xbf16>, vector<32x32xbf16>, vector<8x32xf32> -> vector<8x32xf32>
    %c0_21 = arith.constant 0 : index
    %c0_22 = arith.constant 0 : index
    %26 = vector.load %arg10[%c0_21, %c0_22] : memref<1x32xf32, #tpu.memory_space<vmem>>, vector<1x32xf32>
    %27 = vector.broadcast %26 : vector<1x32xf32> to vector<8x32xf32>
    %28 = arith.addf %25, %27 : vector<8x32xf32>
    %29 = vector.extract_strided_slice %14 {offsets = [0, 0], sizes = [8, 8], strides = [1, 1]} : vector<8x32xf32> to vector<8x8xf32>
    %30 = vector.extract_strided_slice %21 {offsets = [0, 0], sizes = [8, 8], strides = [1, 1]} : vector<8x32xf32> to vector<8x8xf32>
    %31 = vector.extract_strided_slice %28 {offsets = [0, 0], sizes = [8, 8], strides = [1, 1]} : vector<8x32xf32> to vector<8x8xf32>
    %32 = arith.truncf %29 : vector<8x8xf32> to vector<8x8xbf16>
    %33 = arith.truncf %30 : vector<8x8xf32> to vector<8x8xbf16>
    %cst_23 = arith.constant dense<0.000000e+00> : vector<8x8xf32>
    %34 = tpu.matmul %32, %33, %cst_23 {dimension_numbers = #tpu.dot_dimension_numbers<[1], [1], [0], [0], [0, 0, 1, 0], [], []>} : vector<8x8xbf16>, vector<8x8xbf16>, vector<8x8xf32> -> vector<8x8xf32>
    %cst_24 = arith.constant dense<0xFF800000> : vector<8xf32>
    %35 = vector.multi_reduction <maximumf>, %34, %cst_24 [1] : vector<8x8xf32> to vector<8xf32>
    %36 = vector.shape_cast %35 : vector<8xf32> to vector<8x1xf32>
    %37 = vector.broadcast %36 : vector<8x1xf32> to vector<8x8xf32>
    %38 = arith.subf %34, %37 : vector<8x8xf32>
    %39 = math.exp %38 : vector<8x8xf32>
    %cst_25 = arith.constant dense<0.000000e+00> : vector<8xf32>
    %40 = vector.multi_reduction <add>, %39, %cst_25 [1] : vector<8x8xf32> to vector<8xf32>
    %41 = vector.shape_cast %40 : vector<8xf32> to vector<8x1xf32>
    %42 = tpu.reciprocal %41 {approx = true} : vector<8x1xf32> -> vector<8x1xf32>
    %43 = vector.broadcast %42 : vector<8x1xf32> to vector<8x8xf32>
    %44 = arith.mulf %39, %43 : vector<8x8xf32>
    %45 = arith.truncf %44 : vector<8x8xf32> to vector<8x8xbf16>
    %46 = arith.truncf %31 : vector<8x8xf32> to vector<8x8xbf16>
    %cst_26 = arith.constant dense<0.000000e+00> : vector<8x8xf32>
    %47 = tpu.matmul %45, %46, %cst_26 {dimension_numbers = #tpu.dot_dimension_numbers<[1], [0], [0], [1], [0, 0, 1, 1], [], []>} : vector<8x8xbf16>, vector<8x8xbf16>, vector<8x8xf32> -> vector<8x8xf32>
    %48 = vector.extract_strided_slice %14 {offsets = [0, 8], sizes = [8, 8], strides = [1, 1]} : vector<8x32xf32> to vector<8x8xf32>
    %49 = vector.extract_strided_slice %21 {offsets = [0, 8], sizes = [8, 8], strides = [1, 1]} : vector<8x32xf32> to vector<8x8xf32>
    %50 = vector.extract_strided_slice %28 {offsets = [0, 8], sizes = [8, 8], strides = [1, 1]} : vector<8x32xf32> to vector<8x8xf32>
    %51 = arith.truncf %48 : vector<8x8xf32> to vector<8x8xbf16>
    %52 = arith.truncf %49 : vector<8x8xf32> to vector<8x8xbf16>
    %cst_27 = arith.constant dense<0.000000e+00> : vector<8x8xf32>
    %53 = tpu.matmul %51, %52, %cst_27 {dimension_numbers = #tpu.dot_dimension_numbers<[1], [1], [0], [0], [0, 0, 1, 0], [], []>} : vector<8x8xbf16>, vector<8x8xbf16>, vector<8x8xf32> -> vector<8x8xf32>
    %cst_28 = arith.constant dense<0xFF800000> : vector<8xf32>
    %54 = vector.multi_reduction <maximumf>, %53, %cst_28 [1] : vector<8x8xf32> to vector<8xf32>
    %55 = vector.shape_cast %54 : vector<8xf32> to vector<8x1xf32>
    %56 = vector.broadcast %55 : vector<8x1xf32> to vector<8x8xf32>
    %57 = arith.subf %53, %56 : vector<8x8xf32>
    %58 = math.exp %57 : vector<8x8xf32>
    %cst_29 = arith.constant dense<0.000000e+00> : vector<8xf32>
    %59 = vector.multi_reduction <add>, %58, %cst_29 [1] : vector<8x8xf32> to vector<8xf32>
    %60 = vector.shape_cast %59 : vector<8xf32> to vector<8x1xf32>
    %61 = tpu.reciprocal %60 {approx = true} : vector<8x1xf32> -> vector<8x1xf32>
    %62 = vector.broadcast %61 : vector<8x1xf32> to vector<8x8xf32>
    %63 = arith.mulf %58, %62 : vector<8x8xf32>
    %64 = arith.truncf %63 : vector<8x8xf32> to vector<8x8xbf16>
    %65 = arith.truncf %50 : vector<8x8xf32> to vector<8x8xbf16>
    %cst_30 = arith.constant dense<0.000000e+00> : vector<8x8xf32>
    %66 = tpu.matmul %64, %65, %cst_30 {dimension_numbers = #tpu.dot_dimension_numbers<[1], [0], [0], [1], [0, 0, 1, 1], [], []>} : vector<8x8xbf16>, vector<8x8xbf16>, vector<8x8xf32> -> vector<8x8xf32>
    %67 = vector.extract_strided_slice %14 {offsets = [0, 16], sizes = [8, 8], strides = [1, 1]} : vector<8x32xf32> to vector<8x8xf32>
    %68 = vector.extract_strided_slice %21 {offsets = [0, 16], sizes = [8, 8], strides = [1, 1]} : vector<8x32xf32> to vector<8x8xf32>
    %69 = vector.extract_strided_slice %28 {offsets = [0, 16], sizes = [8, 8], strides = [1, 1]} : vector<8x32xf32> to vector<8x8xf32>
    %70 = arith.truncf %67 : vector<8x8xf32> to vector<8x8xbf16>
    %71 = arith.truncf %68 : vector<8x8xf32> to vector<8x8xbf16>
    %cst_31 = arith.constant dense<0.000000e+00> : vector<8x8xf32>
    %72 = tpu.matmul %70, %71, %cst_31 {dimension_numbers = #tpu.dot_dimension_numbers<[1], [1], [0], [0], [0, 0, 1, 0], [], []>} : vector<8x8xbf16>, vector<8x8xbf16>, vector<8x8xf32> -> vector<8x8xf32>
    %cst_32 = arith.constant dense<0xFF800000> : vector<8xf32>
    %73 = vector.multi_reduction <maximumf>, %72, %cst_32 [1] : vector<8x8xf32> to vector<8xf32>
    %74 = vector.shape_cast %73 : vector<8xf32> to vector<8x1xf32>
    %75 = vector.broadcast %74 : vector<8x1xf32> to vector<8x8xf32>
    %76 = arith.subf %72, %75 : vector<8x8xf32>
    %77 = math.exp %76 : vector<8x8xf32>
    %cst_33 = arith.constant dense<0.000000e+00> : vector<8xf32>
    %78 = vector.multi_reduction <add>, %77, %cst_33 [1] : vector<8x8xf32> to vector<8xf32>
    %79 = vector.shape_cast %78 : vector<8xf32> to vector<8x1xf32>
    %80 = tpu.reciprocal %79 {approx = true} : vector<8x1xf32> -> vector<8x1xf32>
    %81 = vector.broadcast %80 : vector<8x1xf32> to vector<8x8xf32>
    %82 = arith.mulf %77, %81 : vector<8x8xf32>
    %83 = arith.truncf %82 : vector<8x8xf32> to vector<8x8xbf16>
    %84 = arith.truncf %69 : vector<8x8xf32> to vector<8x8xbf16>
    %cst_34 = arith.constant dense<0.000000e+00> : vector<8x8xf32>
    %85 = tpu.matmul %83, %84, %cst_34 {dimension_numbers = #tpu.dot_dimension_numbers<[1], [0], [0], [1], [0, 0, 1, 1], [], []>} : vector<8x8xbf16>, vector<8x8xbf16>, vector<8x8xf32> -> vector<8x8xf32>
    %86 = vector.extract_strided_slice %14 {offsets = [0, 24], sizes = [8, 8], strides = [1, 1]} : vector<8x32xf32> to vector<8x8xf32>
    %87 = vector.extract_strided_slice %21 {offsets = [0, 24], sizes = [8, 8], strides = [1, 1]} : vector<8x32xf32> to vector<8x8xf32>
    %88 = vector.extract_strided_slice %28 {offsets = [0, 24], sizes = [8, 8], strides = [1, 1]} : vector<8x32xf32> to vector<8x8xf32>
    %89 = arith.truncf %86 : vector<8x8xf32> to vector<8x8xbf16>
    %90 = arith.truncf %87 : vector<8x8xf32> to vector<8x8xbf16>
    %cst_35 = arith.constant dense<0.000000e+00> : vector<8x8xf32>
    %91 = tpu.matmul %89, %90, %cst_35 {dimension_numbers = #tpu.dot_dimension_numbers<[1], [1], [0], [0], [0, 0, 1, 0], [], []>} : vector<8x8xbf16>, vector<8x8xbf16>, vector<8x8xf32> -> vector<8x8xf32>
    %cst_36 = arith.constant dense<0xFF800000> : vector<8xf32>
    %92 = vector.multi_reduction <maximumf>, %91, %cst_36 [1] : vector<8x8xf32> to vector<8xf32>
    %93 = vector.shape_cast %92 : vector<8xf32> to vector<8x1xf32>
    %94 = vector.broadcast %93 : vector<8x1xf32> to vector<8x8xf32>
    %95 = arith.subf %91, %94 : vector<8x8xf32>
    %96 = math.exp %95 : vector<8x8xf32>
    %cst_37 = arith.constant dense<0.000000e+00> : vector<8xf32>
    %97 = vector.multi_reduction <add>, %96, %cst_37 [1] : vector<8x8xf32> to vector<8xf32>
    %98 = vector.shape_cast %97 : vector<8xf32> to vector<8x1xf32>
    %99 = tpu.reciprocal %98 {approx = true} : vector<8x1xf32> -> vector<8x1xf32>
    %100 = vector.broadcast %99 : vector<8x1xf32> to vector<8x8xf32>
    %101 = arith.mulf %96, %100 : vector<8x8xf32>
    %102 = arith.truncf %101 : vector<8x8xf32> to vector<8x8xbf16>
    %103 = arith.truncf %88 : vector<8x8xf32> to vector<8x8xbf16>
    %cst_38 = arith.constant dense<0.000000e+00> : vector<8x8xf32>
    %104 = tpu.matmul %102, %103, %cst_38 {dimension_numbers = #tpu.dot_dimension_numbers<[1], [0], [0], [1], [0, 0, 1, 1], [], []>} : vector<8x8xbf16>, vector<8x8xbf16>, vector<8x8xf32> -> vector<8x8xf32>
    %105 = tpu.concatenate %47, %66, %85, %104 in 1 : vector<8x8xf32>, vector<8x8xf32>, vector<8x8xf32>, vector<8x8xf32> -> vector<8x32xf32>
    %c0_39 = arith.constant 0 : index
    %c0_40 = arith.constant 0 : index
    %106 = vector.load %arg11[%c0_39, %c0_40] : memref<32x32xf32, #tpu.memory_space<vmem>>, vector<32x32xf32>
    %107 = arith.truncf %105 : vector<8x32xf32> to vector<8x32xbf16>
    %108 = arith.truncf %106 : vector<32x32xf32> to vector<32x32xbf16>
    %cst_41 = arith.constant dense<0.000000e+00> : vector<8x32xf32>
    %109 = tpu.matmul %107, %108, %cst_41 {dimension_numbers = #tpu.dot_dimension_numbers<[1], [0], [0], [1], [0, 0, 1, 1], [], []>} : vector<8x32xbf16>, vector<32x32xbf16>, vector<8x32xf32> -> vector<8x32xf32>
    %c0_42 = arith.constant 0 : index
    %c0_43 = arith.constant 0 : index
    %110 = vector.load %arg12[%c0_42, %c0_43] : memref<1x32xf32, #tpu.memory_space<vmem>>, vector<1x32xf32>
    %111 = vector.broadcast %110 : vector<1x32xf32> to vector<8x32xf32>
    %112 = arith.addf %109, %111 : vector<8x32xf32>
    %c0_44 = arith.constant 0 : index
    %c0_45 = arith.constant 0 : index
    %c0_46 = arith.constant 0 : index
    %113 = vector.load %arg13[%c0_44, %c0_45, %c0_46] : memref<1x8x32xf32, #tpu.memory_space<vmem>>, vector<1x8x32xf32>
    %114 = vector.shape_cast %113 : vector<1x8x32xf32> to vector<8x32xf32>
    %115 = vector.shape_cast %112 : vector<8x32xf32> to vector<1x8x32xf32>
    tpu.vector_store %arg13[%c0_44, %c0_45, %c0_46], %115 {strides = array<i32>} : memref<1x8x32xf32, #tpu.memory_space<vmem>>, vector<1x8x32xf32>,
    return
  }
  func.func @transform_0(%arg0: i32, %arg1: i32) -> (i32, i32, i32) {
    %c0_i32 = arith.constant 0 : i32
    %c0_i32_0 = arith.constant 0 : i32
    return %arg0, %arg1, %c0_i32 : i32, i32, i32
  }
  func.func @transform_1(%arg0: i32, %arg1: i32) -> (i32, i32, i32) {
    %c0_i32 = arith.constant 0 : i32
    %c0_i32_0 = arith.constant 0 : i32
    %c0_i32_1 = arith.constant 0 : i32
    return %arg0, %c0_i32, %c0_i32_0 : i32, i32, i32
  }
  func.func @transform_2(%arg0: i32, %arg1: i32) -> (i32, i32, i32) {
    %c0_i32 = arith.constant 0 : i32
    %c0_i32_0 = arith.constant 0 : i32
    %c0_i32_1 = arith.constant 0 : i32
    return %arg0, %c0_i32, %c0_i32_0 : i32, i32, i32
  }
  func.func @transform_3(%arg0: i32, %arg1: i32) -> (i32, i32) {
    %c0_i32 = arith.constant 0 : i32
    %c0_i32_0 = arith.constant 0 : i32
    %c0_i32_1 = arith.constant 0 : i32
    return %c0_i32, %c0_i32_0 : i32, i32
  }
  func.func @transform_4(%arg0: i32, %arg1: i32) -> (i32, i32) {
    %c0_i32 = arith.constant 0 : i32
    %c0_i32_0 = arith.constant 0 : i32
    %c0_i32_1 = arith.constant 0 : i32
    return %c0_i32, %c0_i32_0 : i32, i32
  }
  func.func @transform_5(%arg0: i32, %arg1: i32) -> (i32, i32) {
    %c0_i32 = arith.constant 0 : i32
    %c0_i32_0 = arith.constant 0 : i32
    %c0_i32_1 = arith.constant 0 : i32
    return %c0_i32, %c0_i32_0 : i32, i32
  }
  func.func @transform_6(%arg0: i32, %arg1: i32) -> (i32, i32) {
    %c0_i32 = arith.constant 0 : i32
    %c0_i32_0 = arith.constant 0 : i32
    %c0_i32_1 = arith.constant 0 : i32
    return %c0_i32, %c0_i32_0 : i32, i32
  }
  func.func @transform_7(%arg0: i32, %arg1: i32) -> (i32, i32) {
    %c0_i32 = arith.constant 0 : i32
    %c0_i32_0 = arith.constant 0 : i32
    %c0_i32_1 = arith.constant 0 : i32
    return %c0_i32, %c0_i32_0 : i32, i32
  }
  func.func @transform_8(%arg0: i32, %arg1: i32) -> (i32, i32) {
    %c0_i32 = arith.constant 0 : i32
    %c0_i32_0 = arith.constant 0 : i32
    %c0_i32_1 = arith.constant 0 : i32
    return %c0_i32, %c0_i32_0 : i32, i32
  }
  func.func @transform_9(%arg0: i32, %arg1: i32) -> (i32, i32) {
    %c0_i32 = arith.constant 0 : i32
    %c0_i32_0 = arith.constant 0 : i32
    %c0_i32_1 = arith.constant 0 : i32
    return %c0_i32, %c0_i32_0 : i32, i32
  }
  func.func @transform_10(%arg0: i32, %arg1: i32) -> (i32, i32) {
    %c0_i32 = arith.constant 0 : i32
    %c0_i32_0 = arith.constant 0 : i32
    %c0_i32_1 = arith.constant 0 : i32
    return %c0_i32, %c0_i32_0 : i32, i32
  }
  func.func @transform_11(%arg0: i32, %arg1: i32) -> (i32, i32, i32) {
    %c0_i32 = arith.constant 0 : i32
    %c0_i32_0 = arith.constant 0 : i32
    return %arg0, %arg1, %c0_i32 : i32, i32, i32
  }
}

</mosaic_0001>

<llo_original>
// kernel: tpu_custom_call.1
$region0: #{tpu_custom_call.1}
  #allocation0 [shape = 'u32[]', space=smem, size = 0x4, offset = 0x4, fixed_abs, tag = 'smem constant byte address 0x4 - core index']
  #allocation1 [shape = 'u32[144,128]{1,0:T(1,128)}', space=vmem, size = 0x12000, scoped, tag = 'internal scratch']
  %s0 = inlined_call_operand.hbm [shape: f32[2,8,32], index: 0, kind: input, shape index: {}]
  %s1 = inlined_call_operand.hbm [shape: f32[2,8,32], index: 1, kind: input, shape index: {}]
  %s2 = inlined_call_operand.hbm [shape: f32[2,8,32], index: 2, kind: input, shape index: {}]
  %s3 = inlined_call_operand.hbm [shape: f32[32,32], index: 3, kind: input, shape index: {}]
  %s4 = inlined_call_operand.vmem [shape: f32[1,32], index: 4, kind: input, shape index: {}]
  %s5 = inlined_call_operand.hbm [shape: f32[32,32], index: 5, kind: input, shape index: {}]
  %s6 = inlined_call_operand.vmem [shape: f32[1,32], index: 6, kind: input, shape index: {}]
  %s7 = inlined_call_operand.hbm [shape: f32[32,32], index: 7, kind: input, shape index: {}]
  %s8 = inlined_call_operand.vmem [shape: f32[1,32], index: 8, kind: input, shape index: {}]
  %s9 = inlined_call_operand.hbm [shape: f32[32,32], index: 9, kind: input, shape index: {}]
  %s10 = inlined_call_operand.vmem [shape: f32[1,32], index: 10, kind: input, shape index: {}]
  %s11 = inlined_call_operand.hbm [shape: f32[2,8,32], index: 11, kind: output, shape index: {}]
  %s12 = sld [smem:[#allocation0]]
  $region105: #{tpu_custom_call.1} parent=0
    _
  %s14 = ssub.s32 1, %s12
  %s15 = scalar_select 0, %s14, %s12
  $region1: #{tpu_custom_call.1} parent=0
    #allocation2 [shape = 'u8[8192]{0}', space=vmem, size = 0x2000, scoped, tag = 'input window, operand 0']
    #allocation3 [shape = 's32[2]{0}', space=sflag, size = 0x8, scoped, tag = 'scoped memory for tpu_custom_call.1']
    #allocation4 [shape = 's32[2]{0}', space=sflag, size = 0x8, scoped, tag = 'scoped memory for tpu_custom_call.1']
    #allocation5 [shape = 'u8[8192]{0}', space=vmem, size = 0x2000, scoped, tag = 'input window, operand 1']
    #allocation6 [shape = 's32[2]{0}', space=sflag, size = 0x8, scoped, tag = 'scoped memory for tpu_custom_call.1']
    #allocation7 [shape = 'u8[8192]{0}', space=vmem, size = 0x2000, scoped, tag = 'input window, operand 2']
    #allocation8 [shape = 'u8[16384]{0}', space=vmem, size = 0x4000, scoped, tag = 'input window, operand 3, single buffered']
    #allocation9 [shape = 's32[1]{0}', space=sflag, size = 0x4, scoped, tag = 'scoped memory for tpu_custom_call.1']
    #allocation10 [shape = 'u8[16384]{0}', space=vmem, size = 0x4000, scoped, tag = 'input window, operand 5, single buffered']
    #allocation11 [shape = 'u8[16384]{0}', space=vmem, size = 0x4000, scoped, tag = 'input window, operand 7, single buffered']
    #allocation12 [shape = 's32[1]{0}', space=sflag, size = 0x4, scoped, tag = 'scoped memory for tpu_custom_call.1']
    #allocation13 [shape = 'u8[16384]{0}', space=vmem, size = 0x4000, scoped, tag = 'input window, operand 9, single buffered']
    #allocation14 [shape = 'u8[8192]{0}', space=vmem, size = 0x2000, scoped, tag = 'output window, operand 0']
    %16 = vsyncpa [#allocation3], 0
    %s17 = scalar_lea.sflag [#allocation3], 1
    %18 = vsyncpa %s17, 0
    %19 = vsyncpa [#allocation6], 0
    %s20 = scalar_lea.sflag [#allocation6], 1
    %21 = vsyncpa %s20, 0
    %22 = vsyncpa [#allocation9], 0
    %23 = vsyncpa [#allocation12], 0
    %24 = vsyncpa [#allocation4], 0
    %s25 = scalar_lea.sflag [#allocation4], 1
    %26 = vsyncpa %s25, 0
    loop: start=0, step=1, limit=4
    $region2: #{tpu_custom_call.1} parent=1 // loop_pre_header
      _
    $region3: #{tpu_custom_call.1} parent=1 // loop_header
      %s28 = sphi 0, %s32
      %p29 = scmp.ge.s32.totalorder %s28, 4
      %s35 = sphi 0, %s47
      %s36 = sphi 0, %s43
      %s37 = sphi 0, %s35
      %s38 = sphi 0, %s36
      %s39 = sphi 0, %s37
      %s40 = sphi 0, %s38
      %s52 = sphi 0, %s54
      %s55 = sphi 0, %s52
      %s56 = sphi 0, %s55
      %s72 = sphi 0, %s56
      %s78 = sphi 0, %s80
      %s81 = sphi 0, %s78
      %s82 = sphi 0, %s81
      %s98 = sphi 0, %s82
      %s104 = sphi 0, %s106
      %s107 = sphi 0, %s104
      %s108 = sphi 0, %s107
      %s124 = sphi 0, %s108
      %s128 = sphi 0, %s128
      %s130 = sphi 0, %s128
      %s131 = sphi 0, %s130
      %s145 = sphi 0, %s131
      %s149 = sphi 0, %s149
      %s151 = sphi 0, %s149
      %s152 = sphi 0, %s151
      %s166 = sphi 0, %s152
      %s170 = sphi 0, %s170
      %s172 = sphi 0, %s170
      %s173 = sphi 0, %s172
      %s187 = sphi 0, %s173
      %s191 = sphi 0, %s191
      %s193 = sphi 0, %s191
      %s194 = sphi 0, %s193
      %s208 = sphi 0, %s194
      %s212 = sphi 0, %s212
      %s214 = sphi 0, %s212
      %s215 = sphi 0, %s214
      %s229 = sphi 0, %s215
      %s233 = sphi 0, %s233
      %s235 = sphi 0, %s233
      %s236 = sphi 0, %s235
      %s250 = sphi 0, %s236
      %s254 = sphi 0, %s254
      %s256 = sphi 0, %s254
      %s257 = sphi 0, %s256
      %s271 = sphi 0, %s257
      %s275 = sphi 0, %s275
      %s277 = sphi 0, %s275
      %s278 = sphi 0, %s277
      %s292 = sphi 0, %s278
      %s300 = sphi 0, %s302
      %s303 = sphi 0, %s300
      %s304 = sphi 0, %s303
      %s320 = sphi 0, %s304
    $region4: #{tpu_custom_call.1} parent=1 // loop_header_branch
      %31 = sbr.rel (%p29) target = $region8
    $region5: #{tpu_custom_call.1} parent=1 // loop_body
      %s33 = ssub.s32 %s28, 1
      %s34 = ssub.s32 %s28, 2
      %s41 = sadd.s32 1, %s36
      %p42 = scmp.ge.s32.totalorder %s41, 1
      %s43 = scalar_select %p42, 0, %s41
      %s44 = sadd.s32 1, %s35
      %s45 = scalar_select %p42, %s44, %s35
      %p46 = scmp.ge.s32.totalorder %s45, 2
      %s47 = scalar_select %p46, 0, %s45
      %s48 = ssub.s32 %s35, %s47
      %s49 = ssub.s32 %s36, %s43
      %s50 = sor.u32 %s48, %s49
      %p51 = scmp.eq.s32.totalorder %s50, 0
      %s53 = sadd.s32 %s52, 1
      %s54 = scalar_select %p51, %s52, %s53
      %p57 = pneg %p51
      %p58 = scmp.eq.s32.totalorder %s28, 1
      %p59 = por %p57, %p58
      %p60 = scmp.ne.s32.totalorder %s52, %s55
      %p61 = scmp.eq.s32.totalorder %s28, 0
      %p62 = por %p60, %p61
      %p63 = scmp.ne.s32.totalorder %s52, %s55
      %p64 = scmp.eq.s32.totalorder %s33, 1
      %p65 = por %p63, %p64
      %p66 = scmp.ne.s32.totalorder %s55, %s56
      %p67 = scmp.eq.s32.totalorder %s33, 0
      %p68 = por %p66, %p67
      %p69 = scmp.ne.s32.totalorder %s55, %s56
      %p70 = scmp.eq.s32.totalorder %s34, 1
      %p71 = por %p69, %p70
      %p73 = scmp.ne.s32.totalorder %s56, %s72
      %p74 = scmp.eq.s32.totalorder %s34, 0
      %p75 = por %p73, %p74
      %s76 = ssub.s32 %s35, %s47
      %p77 = scmp.eq.s32.totalorder %s76, 0
      %s79 = sadd.s32 %s78, 1
      %s80 = scalar_select %p77, %s78, %s79
      %p83 = pneg %p77
      %p84 = scmp.eq.s32.totalorder %s28, 1
      %p85 = por %p83, %p84
      %p86 = scmp.ne.s32.totalorder %s78, %s81
      %p87 = scmp.eq.s32.totalorder %s28, 0
      %p88 = por %p86, %p87
      %p89 = scmp.ne.s32.totalorder %s78, %s81
      %p90 = scmp.eq.s32.totalorder %s33, 1
      %p91 = por %p89, %p90
      %p92 = scmp.ne.s32.totalorder %s81, %s82
      %p93 = scmp.eq.s32.totalorder %s33, 0
      %p94 = por %p92, %p93
      %p95 = scmp.ne.s32.totalorder %s81, %s82
      %p96 = scmp.eq.s32.totalorder %s34, 1
      %p97 = por %p95, %p96
      %p99 = scmp.ne.s32.totalorder %s82, %s98
      %p100 = scmp.eq.s32.totalorder %s34, 0
      %p101 = por %p99, %p100
      %s102 = ssub.s32 %s35, %s47
      %p103 = scmp.eq.s32.totalorder %s102, 0
      %s105 = sadd.s32 %s104, 1
      %s106 = scalar_select %p103, %s104, %s105
      %p109 = pneg %p103
      %p110 = scmp.eq.s32.totalorder %s28, 1
      %p111 = por %p109, %p110
      %p112 = scmp.ne.s32.totalorder %s104, %s107
      %p113 = scmp.eq.s32.totalorder %s28, 0
      %p114 = por %p112, %p113
      %p115 = scmp.ne.s32.totalorder %s104, %s107
      %p116 = scmp.eq.s32.totalorder %s33, 1
      %p117 = por %p115, %p116
      %p118 = scmp.ne.s32.totalorder %s107, %s108
      %p119 = scmp.eq.s32.totalorder %s33, 0
      %p120 = por %p118, %p119
      %p121 = scmp.ne.s32.totalorder %s107, %s108
      %p122 = scmp.eq.s32.totalorder %s34, 1
      %p123 = por %p121, %p122
      %p125 = scmp.ne.s32.totalorder %s108, %s124
      %p126 = scmp.eq.s32.totalorder %s34, 0
      %p127 = por %p125, %p126
      %s129 = sadd.s32 %s128, 1
      %p132 = scmp.eq.s32.totalorder %s28, 1
      %p133 = scmp.ne.s32.totalorder %s128, %s130
      %p134 = scmp.eq.s32.totalorder %s28, 0
      %p135 = por %p133, %p134
      %p136 = scmp.ne.s32.totalorder %s128, %s130
      %p137 = scmp.eq.s32.totalorder %s33, 1
      %p138 = por %p136, %p137
      %p139 = scmp.ne.s32.totalorder %s130, %s131
      %p140 = scmp.eq.s32.totalorder %s33, 0
      %p141 = por %p139, %p140
      %p142 = scmp.ne.s32.totalorder %s130, %s131
      %p143 = scmp.eq.s32.totalorder %s34, 1
      %p144 = por %p142, %p143
      %p146 = scmp.ne.s32.totalorder %s131, %s145
      %p147 = scmp.eq.s32.totalorder %s34, 0
      %p148 = por %p146, %p147
      %s150 = sadd.s32 %s149, 1
      %p153 = scmp.eq.s32.totalorder %s28, 1
      %p154 = scmp.ne.s32.totalorder %s149, %s151
      %p155 = scmp.eq.s32.totalorder %s28, 0
      %p156 = por %p154, %p155
      %p157 = scmp.ne.s32.totalorder %s149, %s151
      %p158 = scmp.eq.s32.totalorder %s33, 1
      %p159 = por %p157, %p158
      %p160 = scmp.ne.s32.totalorder %s151, %s152
      %p161 = scmp.eq.s32.totalorder %s33, 0
      %p162 = por %p160, %p161
      %p163 = scmp.ne.s32.totalorder %s151, %s152
      %p164 = scmp.eq.s32.totalorder %s34, 1
      %p165 = por %p163, %p164
      %p167 = scmp.ne.s32.totalorder %s152, %s166
      %p168 = scmp.eq.s32.totalorder %s34, 0
      %p169 = por %p167, %p168
      %s171 = sadd.s32 %s170, 1
      %p174 = scmp.eq.s32.totalorder %s28, 1
      %p175 = scmp.ne.s32.totalorder %s170, %s172
      %p176 = scmp.eq.s32.totalorder %s28, 0
      %p177 = por %p175, %p176
      %p178 = scmp.ne.s32.totalorder %s170, %s172
      %p179 = scmp.eq.s32.totalorder %s33, 1
      %p180 = por %p178, %p179
      %p181 = scmp.ne.s32.totalorder %s172, %s173
      %p182 = scmp.eq.s32.totalorder %s33, 0
      %p183 = por %p181, %p182
      %p184 = scmp.ne.s32.totalorder %s172, %s173
      %p185 = scmp.eq.s32.totalorder %s34, 1
      %p186 = por %p184, %p185
      %p188 = scmp.ne.s32.totalorder %s173, %s187
      %p189 = scmp.eq.s32.totalorder %s34, 0
      %p190 = por %p188, %p189
      %s192 = sadd.s32 %s191, 1
      %p195 = scmp.eq.s32.totalorder %s28, 1
      %p196 = scmp.ne.s32.totalorder %s191, %s193
      %p197 = scmp.eq.s32.totalorder %s28, 0
      %p198 = por %p196, %p197
      %p199 = scmp.ne.s32.totalorder %s191, %s193
      %p200 = scmp.eq.s32.totalorder %s33, 1
      %p201 = por %p199, %p200
      %p202 = scmp.ne.s32.totalorder %s193, %s194
      %p203 = scmp.eq.s32.totalorder %s33, 0
      %p204 = por %p202, %p203
      %p205 = scmp.ne.s32.totalorder %s193, %s194
      %p206 = scmp.eq.s32.totalorder %s34, 1
      %p207 = por %p205, %p206
      %p209 = scmp.ne.s32.totalorder %s194, %s208
      %p210 = scmp.eq.s32.totalorder %s34, 0
      %p211 = por %p209, %p210
      %s213 = sadd.s32 %s212, 1
      %p216 = scmp.eq.s32.totalorder %s28, 1
      %p217 = scmp.ne.s32.totalorder %s212, %s214
      %p218 = scmp.eq.s32.totalorder %s28, 0
      %p219 = por %p217, %p218
      %p220 = scmp.ne.s32.totalorder %s212, %s214
      %p221 = scmp.eq.s32.totalorder %s33, 1
      %p222 = por %p220, %p221
      %p223 = scmp.ne.s32.totalorder %s214, %s215
      %p224 = scmp.eq.s32.totalorder %s33, 0
      %p225 = por %p223, %p224
      %p226 = scmp.ne.s32.totalorder %s214, %s215
      %p227 = scmp.eq.s32.totalorder %s34, 1
      %p228 = por %p226, %p227
      %p230 = scmp.ne.s32.totalorder %s215, %s229
      %p231 = scmp.eq.s32.totalorder %s34, 0
      %p232 = por %p230, %p231
      %s234 = sadd.s32 %s233, 1
      %p237 = scmp.eq.s32.totalorder %s28, 1
      %p238 = scmp.ne.s32.totalorder %s233, %s235
      %p239 = scmp.eq.s32.totalorder %s28, 0
      %p240 = por %p238, %p239
      %p241 = scmp.ne.s32.totalorder %s233, %s235
      %p242 = scmp.eq.s32.totalorder %s33, 1
      %p243 = por %p241, %p242
      %p244 = scmp.ne.s32.totalorder %s235, %s236
      %p245 = scmp.eq.s32.totalorder %s33, 0
      %p246 = por %p244, %p245
      %p247 = scmp.ne.s32.totalorder %s235, %s236
      %p248 = scmp.eq.s32.totalorder %s34, 1
      %p249 = por %p247, %p248
      %p251 = scmp.ne.s32.totalorder %s236, %s250
      %p252 = scmp.eq.s32.totalorder %s34, 0
      %p253 = por %p251, %p252
      %s255 = sadd.s32 %s254, 1
      %p258 = scmp.eq.s32.totalorder %s28, 1
      %p259 = scmp.ne.s32.totalorder %s254, %s256
      %p260 = scmp.eq.s32.totalorder %s28, 0
      %p261 = por %p259, %p260
      %p262 = scmp.ne.s32.totalorder %s254, %s256
      %p263 = scmp.eq.s32.totalorder %s33, 1
      %p264 = por %p262, %p263
      %p265 = scmp.ne.s32.totalorder %s256, %s257
      %p266 = scmp.eq.s32.totalorder %s33, 0
      %p267 = por %p265, %p266
      %p268 = scmp.ne.s32.totalorder %s256, %s257
      %p269 = scmp.eq.s32.totalorder %s34, 1
      %p270 = por %p268, %p269
      %p272 = scmp.ne.s32.totalorder %s257, %s271
      %p273 = scmp.eq.s32.totalorder %s34, 0
      %p274 = por %p272, %p273
      %s276 = sadd.s32 %s275, 1
      %p279 = scmp.eq.s32.totalorder %s28, 1
      %p280 = scmp.ne.s32.totalorder %s275, %s277
      %p281 = scmp.eq.s32.totalorder %s28, 0
      %p282 = por %p280, %p281
      %p283 = scmp.ne.s32.totalorder %s275, %s277
      %p284 = scmp.eq.s32.totalorder %s33, 1
      %p285 = por %p283, %p284
      %p286 = scmp.ne.s32.totalorder %s277, %s278
      %p287 = scmp.eq.s32.totalorder %s33, 0
      %p288 = por %p286, %p287
      %p289 = scmp.ne.s32.totalorder %s277, %s278
      %p290 = scmp.eq.s32.totalorder %s34, 1
      %p291 = por %p289, %p290
      %p293 = scmp.ne.s32.totalorder %s278, %s292
      %p294 = scmp.eq.s32.totalorder %s34, 0
      %p295 = por %p293, %p294
      %s296 = ssub.s32 %s35, %s47
      %s297 = ssub.s32 %s36, %s43
      %s298 = sor.u32 %s296, %s297
      %p299 = scmp.eq.s32.totalorder %s298, 0
      %s301 = sadd.s32 %s300, 1
      %s302 = scalar_select %p299, %s300, %s301
      %p305 = pneg %p299
      %p306 = scmp.eq.s32.totalorder %s28, 1
      %p307 = por %p305, %p306
      %p308 = scmp.ne.s32.totalorder %s300, %s303
      %p309 = scmp.eq.s32.totalorder %s28, 0
      %p310 = por %p308, %p309
      %p311 = scmp.ne.s32.totalorder %s300, %s303
      %p312 = scmp.eq.s32.totalorder %s33, 1
      %p313 = por %p311, %p312
      %p314 = scmp.ne.s32.totalorder %s303, %s304
      %p315 = scmp.eq.s32.totalorder %s33, 0
      %p316 = por %p314, %p315
      %p317 = scmp.ne.s32.totalorder %s303, %s304
      %p318 = scmp.eq.s32.totalorder %s34, 1
      %p319 = por %p317, %p318
      %p321 = scmp.ne.s32.totalorder %s304, %s320
      %p322 = scmp.eq.s32.totalorder %s34, 0
      %p323 = por %p321, %p322
      %p324 = scmp.le.s32.totalorder 1, %s28
      %p325 = scmp.lt.s32.totalorder %s28, 3
      %p326 = pnand %p324, %p325
      %p327 = pneg %p326
      // Predicated region
      $region9: #{tpu_custom_call.1} parent=5 // pred_check
        _
      $region10: #{tpu_custom_call.1} parent=5 // pred_check_branch
        %329 = sbr.rel (%p326) target = $region12
      $region11: #{tpu_custom_call.1} parent=5 // pred_region
        %s330 = ssub.s32 %s28, 1
        // Predicated region
        $region13: #{tpu_custom_call.1} parent=11 // pred_check
          %p331 = pneg %p141
        $region14: #{tpu_custom_call.1} parent=11 // pred_check_branch
          %333 = sbr.rel (%p331) target = $region16
        $region15: #{tpu_custom_call.1} parent=11 // pred_region
          %s335 = ssub.s32 512, 512
          %336 = vsyncadd [#allocation9], %s335
          %s337 = sshll.u32 [#allocation8], 4
          %s338 = int_to_ptr.vmem [resolvable:$true] %s337
          %343 = dma.hbm_to_vmem [thread:$0]  %s3, 512, %s338, [#allocation9], 128, 128, 8
        $region16: #{tpu_custom_call.1} parent=11 // pred_fallthru
          _
        // Predicated region
        $region17: #{tpu_custom_call.1} parent=11 // pred_check
          %p344 = pneg %p162
        $region18: #{tpu_custom_call.1} parent=11 // pred_check_branch
          %346 = sbr.rel (%p344) target = $region20
        $region19: #{tpu_custom_call.1} parent=11 // pred_region
          _
        $region20: #{tpu_custom_call.1} parent=11 // pred_fallthru
          _
        // Predicated region
        $region21: #{tpu_custom_call.1} parent=11 // pred_check
          %p347 = pneg %p183
        $region22: #{tpu_custom_call.1} parent=11 // pred_check_branch
          %349 = sbr.rel (%p347) target = $region24
        $region23: #{tpu_custom_call.1} parent=11 // pred_region
          %s351 = ssub.s32 512, 512
          %352 = vsyncadd [#allocation9], %s351
          %s353 = sshll.u32 [#allocation10], 4
          %s354 = int_to_ptr.vmem [resolvable:$true] %s353
          %359 = dma.hbm_to_vmem [thread:$0]  %s5, 512, %s354, [#allocation9], 128, 128, 8
        $region24: #{tpu_custom_call.1} parent=11 // pred_fallthru
          _
        // Predicated region
        $region25: #{tpu_custom_call.1} parent=11 // pred_check
          %p360 = pneg %p204
        $region26: #{tpu_custom_call.1} parent=11 // pred_check_branch
          %362 = sbr.rel (%p360) target = $region28
        $region27: #{tpu_custom_call.1} parent=11 // pred_region
          _
        $region28: #{tpu_custom_call.1} parent=11 // pred_fallthru
          _
        // Predicated region
        $region29: #{tpu_custom_call.1} parent=11 // pred_check
          %p363 = pneg %p225
        $region30: #{tpu_custom_call.1} parent=11 // pred_check_branch
          %365 = sbr.rel (%p363) target = $region32
        $region31: #{tpu_custom_call.1} parent=11 // pred_region
          %s367 = ssub.s32 512, 512
          %368 = vsyncadd [#allocation12], %s367
          %s369 = sshll.u32 [#allocation11], 4
          %s370 = int_to_ptr.vmem [resolvable:$true] %s369
          %375 = dma.hbm_to_vmem [thread:$0]  %s7, 512, %s370, [#allocation12], 128, 128, 8
        $region32: #{tpu_custom_call.1} parent=11 // pred_fallthru
          _
        // Predicated region
        $region33: #{tpu_custom_call.1} parent=11 // pred_check
          %p376 = pneg %p246
        $region34: #{tpu_custom_call.1} parent=11 // pred_check_branch
          %378 = sbr.rel (%p376) target = $region36
        $region35: #{tpu_custom_call.1} parent=11 // pred_region
          _
        $region36: #{tpu_custom_call.1} parent=11 // pred_fallthru
          _
        // Predicated region
        $region37: #{tpu_custom_call.1} parent=11 // pred_check
          %p379 = pneg %p267
        $region38: #{tpu_custom_call.1} parent=11 // pred_check_branch
          %381 = sbr.rel (%p379) target = $region40
        $region39: #{tpu_custom_call.1} parent=11 // pred_region
          %s383 = ssub.s32 512, 512
          %384 = vsyncadd [#allocation12], %s383
          %s385 = sshll.u32 [#allocation13], 4
          %s386 = int_to_ptr.vmem [resolvable:$true] %s385
          %391 = dma.hbm_to_vmem [thread:$0]  %s9, 512, %s386, [#allocation12], 128, 128, 8
        $region40: #{tpu_custom_call.1} parent=11 // pred_fallthru
          _
        // Predicated region
        $region41: #{tpu_custom_call.1} parent=11 // pred_check
          %p392 = pneg %p288
        $region42: #{tpu_custom_call.1} parent=11 // pred_check_branch
          %394 = sbr.rel (%p392) target = $region44
        $region43: #{tpu_custom_call.1} parent=11 // pred_region
          _
        $region44: #{tpu_custom_call.1} parent=11 // pred_fallthru
          _
      $region12: #{tpu_custom_call.1} parent=5 // pred_fallthru
        _
      %p395 = scmp.lt.s32.totalorder %s28, 2
      // Predicated region
      $region45: #{tpu_custom_call.1} parent=5 // pred_check
        %p396 = pneg %p395
      $region46: #{tpu_custom_call.1} parent=5 // pred_check_branch
        %398 = sbr.rel (%p396) target = $region48
      $region47: #{tpu_custom_call.1} parent=5 // pred_region
        // Predicated region
        $region49: #{tpu_custom_call.1} parent=47 // pred_check
          %p399 = pneg %p62
        $region50: #{tpu_custom_call.1} parent=47 // pred_check_branch
          %401 = sbr.rel (%p399) target = $region52
        $region51: #{tpu_custom_call.1} parent=47 // pred_region
          %s402 = sand.u32 %s52, 1
          %s403 = scalar_lea.sflag [#allocation3], %s402
          %s404 = sand.u32 %s52, 1
          %s405 = smul.addr %s404, 8
          %s406 = scalar_lea.vmem [#allocation2], %s405
          %s408 = ssub.s32 128, 128
          %409 = vsyncadd %s403, %s408
          %s410 = sadd.s32 %s36, %s35
          %s411 = smul.addr %s410, 128
          %s412 = scalar_lea.hbm %s0, %s411
          %s414 = sshll.u32 %s406, 4
          %s415 = int_to_ptr.vmem [resolvable:$true] %s414
          %417 = dma.hbm_to_vmem [thread:$0]  %s412, 128, %s415, %s403
        $region52: #{tpu_custom_call.1} parent=47 // pred_fallthru
          _
        // Predicated region
        $region53: #{tpu_custom_call.1} parent=47 // pred_check
          %p418 = pneg %p88
        $region54: #{tpu_custom_call.1} parent=47 // pred_check_branch
          %420 = sbr.rel (%p418) target = $region56
        $region55: #{tpu_custom_call.1} parent=47 // pred_region
          %s421 = sand.u32 %s28, 1
          %s422 = scalar_lea.sflag [#allocation6], %s421
          %s423 = sand.u32 %s78, 1
          %s424 = smul.addr %s423, 8
          %s425 = scalar_lea.vmem [#allocation5], %s424
          %s427 = ssub.s32 128, 128
          %428 = vsyncadd %s422, %s427
          %s429 = smul.addr %s35, 128
          %s430 = scalar_lea.hbm %s1, %s429
          %s432 = sshll.u32 %s425, 4
          %s433 = int_to_ptr.vmem [resolvable:$true] %s432
          %435 = dma.hbm_to_vmem [thread:$0]  %s430, 128, %s433, %s422
        $region56: #{tpu_custom_call.1} parent=47 // pred_fallthru
          _
        // Predicated region
        $region57: #{tpu_custom_call.1} parent=47 // pred_check
          %p436 = pneg %p114
        $region58: #{tpu_custom_call.1} parent=47 // pred_check_branch
          %438 = sbr.rel (%p436) target = $region60
        $region59: #{tpu_custom_call.1} parent=47 // pred_region
          %s439 = sand.u32 %s28, 1
          %s440 = scalar_lea.sflag [#allocation6], %s439
          %s441 = sand.u32 %s104, 1
          %s442 = smul.addr %s441, 8
          %s443 = scalar_lea.vmem [#allocation7], %s442
          %s445 = ssub.s32 128, 128
          %446 = vsyncadd %s440, %s445
          %s447 = smul.addr %s35, 128
          %s448 = scalar_lea.hbm %s2, %s447
          %s450 = sshll.u32 %s443, 4
          %s451 = int_to_ptr.vmem [resolvable:$true] %s450
          %453 = dma.hbm_to_vmem [thread:$0]  %s448, 128, %s451, %s440
        $region60: #{tpu_custom_call.1} parent=47 // pred_fallthru
          _
      $region48: #{tpu_custom_call.1} parent=5 // pred_fallthru
        _
      %p454 = scmp.le.s32.totalorder 1, %s28
      %p455 = scmp.lt.s32.totalorder %s28, 3
      %p456 = pnand %p454, %p455
      %p457 = pneg %p456
      // Predicated region
      $region61: #{tpu_custom_call.1} parent=5 // pred_check
        _
      $region62: #{tpu_custom_call.1} parent=5 // pred_check_branch
        %459 = sbr.rel (%p456) target = $region64
      $region63: #{tpu_custom_call.1} parent=5 // pred_region
        %s460 = ssub.s32 %s28, 1
        %s461 = sand.u32 %s55, 1
        %s462 = scalar_lea.sflag [#allocation3], %s461
        %s463 = sand.u32 %s55, 1
        %s464 = smul.addr %s463, 8
        %s465 = scalar_lea.vmem [#allocation2], %s464
        // Predicated region
        $region65: #{tpu_custom_call.1} parent=63 // pred_check
          %p466 = pneg %p68
        $region66: #{tpu_custom_call.1} parent=63 // pred_check_branch
          %468 = sbr.rel (%p466) target = $region68
        $region67: #{tpu_custom_call.1} parent=63 // pred_region
          %469 = dma.done %s462, 128
        $region68: #{tpu_custom_call.1} parent=63 // pred_fallthru
          _
        %s470 = sand.u32 %s33, 1
        %s471 = scalar_lea.sflag [#allocation6], %s470
        %s472 = sand.u32 %s81, 1
        %s473 = smul.addr %s472, 8
        %s474 = scalar_lea.vmem [#allocation5], %s473
        // Predicated region
        $region69: #{tpu_custom_call.1} parent=63 // pred_check
          %p475 = pneg %p94
        $region70: #{tpu_custom_call.1} parent=63 // pred_check_branch
          %477 = sbr.rel (%p475) target = $region72
        $region71: #{tpu_custom_call.1} parent=63 // pred_region
          %478 = dma.done %s471, 128
        $region72: #{tpu_custom_call.1} parent=63 // pred_fallthru
          _
        %s479 = sand.u32 %s33, 1
        %s480 = scalar_lea.sflag [#allocation6], %s479
        %s481 = sand.u32 %s107, 1
        %s482 = smul.addr %s481, 8
        %s483 = scalar_lea.vmem [#allocation7], %s482
        // Predicated region
        $region73: #{tpu_custom_call.1} parent=63 // pred_check
          %p484 = pneg %p120
        $region74: #{tpu_custom_call.1} parent=63 // pred_check_branch
          %486 = sbr.rel (%p484) target = $region76
        $region75: #{tpu_custom_call.1} parent=63 // pred_region
          %487 = dma.done %s480, 128
        $region76: #{tpu_custom_call.1} parent=63 // pred_fallthru
          _
        // Predicated region
        $region77: #{tpu_custom_call.1} parent=63 // pred_check
          %p488 = pneg %p141
        $region78: #{tpu_custom_call.1} parent=63 // pred_check_branch
          %490 = sbr.rel (%p488) target = $region80
        $region79: #{tpu_custom_call.1} parent=63 // pred_region
          %491 = dma.done [#allocation9], 512
        $region80: #{tpu_custom_call.1} parent=63 // pred_fallthru
          _
        // Predicated region
        $region81: #{tpu_custom_call.1} parent=63 // pred_check
          %p492 = pneg %p183
        $region82: #{tpu_custom_call.1} parent=63 // pred_check_branch
          %494 = sbr.rel (%p492) target = $region84
        $region83: #{tpu_custom_call.1} parent=63 // pred_region
          %495 = dma.done [#allocation9], 512
        $region84: #{tpu_custom_call.1} parent=63 // pred_fallthru
          _
        // Predicated region
        $region85: #{tpu_custom_call.1} parent=63 // pred_check
          %p496 = pneg %p225
        $region86: #{tpu_custom_call.1} parent=63 // pred_check_branch
          %498 = sbr.rel (%p496) target = $region88
        $region87: #{tpu_custom_call.1} parent=63 // pred_region
          %499 = dma.done [#allocation12], 512
        $region88: #{tpu_custom_call.1} parent=63 // pred_fallthru
          _
        // Predicated region
        $region89: #{tpu_custom_call.1} parent=63 // pred_check
          %p500 = pneg %p267
        $region90: #{tpu_custom_call.1} parent=63 // pred_check_branch
          %502 = sbr.rel (%p500) target = $region92
        $region91: #{tpu_custom_call.1} parent=63 // pred_region
          %503 = dma.done [#allocation12], 512
        $region92: #{tpu_custom_call.1} parent=63 // pred_fallthru
          _
        %s504 = sand.u32 %s55, 1
        %s505 = scalar_lea.sflag [#allocation3], %s504
        %s506 = sand.u32 %s55, 1
        %s507 = smul.addr %s506, 8
        %s508 = scalar_lea.vmem [#allocation2], %s507
        %p509 = pneg %p68
        %p510 = pneg %p65
        %s511 = sand.u32 %s33, 1
        %s512 = scalar_lea.sflag [#allocation6], %s511
        %s513 = sand.u32 %s81, 1
        %s514 = smul.addr %s513, 8
        %s515 = scalar_lea.vmem [#allocation5], %s514
        %p516 = pneg %p94
        %p517 = pneg %p91
        %s518 = sand.u32 %s33, 1
        %s519 = scalar_lea.sflag [#allocation6], %s518
        %s520 = sand.u32 %s107, 1
        %s521 = smul.addr %s520, 8
        %s522 = scalar_lea.vmem [#allocation7], %s521
        %p523 = pneg %p120
        %p524 = pneg %p117
        %p525 = pneg %p141
        %p526 = pneg %p138
        %p527 = pneg %p162
        %p528 = pneg %p159
        %p529 = pneg %p183
        %p530 = pneg %p180
        %p531 = pneg %p204
        %p532 = pneg %p201
        %p533 = pneg %p225
        %p534 = pneg %p222
        %p535 = pneg %p246
        %p536 = pneg %p243
        %p537 = pneg %p267
        %p538 = pneg %p264
        %p539 = pneg %p288
        %p540 = pneg %p285
        %p541 = pneg %p316
        %p542 = pneg %p313
        %s543 = sand.u32 %s303, 1
        %s544 = scalar_lea.sflag [#allocation4], %s543
        %s545 = sand.u32 %s303, 1
        %s546 = smul.addr %s545, 8
        %s547 = scalar_lea.vmem [#allocation14], %s546
        %v549 = vld [vmem:[%s465] sm:$0xff]
        %v550 = vld [vmem:[%s474] sm:$0xff]
        %v551 = vld [vmem:[%s483] sm:$0xff]
        %v552 = vld [vmem:[#allocation8] sm:$0xff]
        %v553 = vld [vmem:[#allocation8 + $0x8] sm:$0xff]
        %v554 = vld [vmem:[#allocation8 + $0x10] sm:$0xff]
        %v555 = vld [vmem:[#allocation8 + $0x18] sm:$0xff]
        %v556 = vpack.c.bf16 %v549, %v549
        %v557 = vpack.c.bf16 %v553, %v552
        %v558 = vpack.c.bf16 %v555, %v554
        %v559 = vld [vmem:[%s4] sm:$0x1]
        %v561 = vlaneseq
        %v562 = vshrl.u32 %v561, 7
        %v563 = vsub.s32 0, %v562
        %v564 = vrot.slane %v559, %v563
        %vm566 = vcmask 261120
        %v568 = vsel %vm566, %v556, 0
        %570 = vmatprep.subr.bf16.mxu0 0
        %571 = vmatpush1.bf16.msra.mxu0 0
        %572 = vmatprep.subr.bf16.mxu0 0
        %573 = vmatpush1.bf16.msra.mxu0 0
        %574 = vmatprep.subr.bf16.mxu0 0
        %575 = vmatpush1.bf16.msra.mxu0 0
        %576 = vmatprep.subr.bf16.mxu0 0
        %577 = vmatpush1.bf16.msra.mxu0 0
        %578 = vmatprep.subr.bf16.mxu0 0
        %579 = vmatpush1.bf16.msra.mxu0 0
        %580 = vmatprep.subr.bf16.mxu0 0
        %581 = vmatpush1.bf16.msra.mxu0 0
        %582 = vmatprep.subr.bf16.mxu0 0
        %583 = vmatpush1.bf16.msra.mxu0 %v558
        %584 = vmatprep.subr.bf16.mxu0 0
        %585 = vmatpush1.bf16.msra.mxu0 %v557
        %586 = vmatprep.subr.bf16.mxu0 0
        %587 = vmatpush2.bf16.msra.mxu0 0
        %588 = vmatprep.subr.bf16.mxu0 0
        %589 = vmatpush2.bf16.msra.mxu0 0
        %590 = vmatprep.subr.bf16.mxu0 0
        %591 = vmatpush2.bf16.msra.mxu0 0
        %592 = vmatprep.subr.bf16.mxu0 0
        %593 = vmatpush2.bf16.msra.mxu0 0
        %594 = vmatprep.subr.bf16.mxu0 0
        %595 = vmatpush2.bf16.msra.mxu0 0
        %596 = vmatprep.subr.bf16.mxu0 0
        %597 = vmatpush2.bf16.msra.mxu0 0
        %598 = vmatprep.subr.bf16.mxu0 0
        %599 = vmatpush2.bf16.msra.mxu0 0
        %600 = vmatprep.subr.bf16.mxu0 0
        %601 = vmatpush2.bf16.msra.mxu0 0
        %602 = vmatprep.mubr.bf16.mxu0 0
        %603 = vmatmul.mubr.bf16.gmra.mxu0 %v568
        %v604 = vpop.f32.mrf.mxu0
        %v605 = vadd.f32 %v564, %v604
        %v606 = vpop.f32.mrf.mxu0
        %v607 = vpop.f32.mrf.mxu0
        %v608 = vpop.f32.mrf.mxu0
        %609 = vdwg.mxu0
        %v610 = vmul.f32 %v605, 0.35355338
        %v611 = vld [vmem:[#allocation10] sm:$0xff]
        %v612 = vld [vmem:[#allocation10 + $0x8] sm:$0xff]
        %v613 = vld [vmem:[#allocation10 + $0x10] sm:$0xff]
        %v614 = vld [vmem:[#allocation10 + $0x18] sm:$0xff]
        %v615 = vpack.c.bf16 %v550, %v550
        %v616 = vpack.c.bf16 %v612, %v611
        %v617 = vpack.c.bf16 %v614, %v613
        %v618 = vld [vmem:[%s6] sm:$0x1]
        %v620 = vlaneseq
        %v621 = vshrl.u32 %v620, 7
        %v622 = vsub.s32 0, %v621
        %v623 = vrot.slane %v618, %v622
        %v626 = vsel %vm566, %v615, 0
        %628 = vmatprep.subr.bf16.mxu0 0
        %629 = vmatpush1.bf16.msra.mxu0 0
        %630 = vmatprep.subr.bf16.mxu0 0
        %631 = vmatpush1.bf16.msra.mxu0 0
        %632 = vmatprep.subr.bf16.mxu0 0
        %633 = vmatpush1.bf16.msra.mxu0 0
        %634 = vmatprep.subr.bf16.mxu0 0
        %635 = vmatpush1.bf16.msra.mxu0 0
        %636 = vmatprep.subr.bf16.mxu0 0
        %637 = vmatpush1.bf16.msra.mxu0 0
        %638 = vmatprep.subr.bf16.mxu0 0
        %639 = vmatpush1.bf16.msra.mxu0 0
        %640 = vmatprep.subr.bf16.mxu0 0
        %641 = vmatpush1.bf16.msra.mxu0 %v617
        %642 = vmatprep.subr.bf16.mxu0 0
        %643 = vmatpush1.bf16.msra.mxu0 %v616
        %644 = vmatprep.subr.bf16.mxu0 0
        %645 = vmatpush2.bf16.msra.mxu0 0
        %646 = vmatprep.subr.bf16.mxu0 0
        %647 = vmatpush2.bf16.msra.mxu0 0
        %648 = vmatprep.subr.bf16.mxu0 0
        %649 = vmatpush2.bf16.msra.mxu0 0
        %650 = vmatprep.subr.bf16.mxu0 0
        %651 = vmatpush2.bf16.msra.mxu0 0
        %652 = vmatprep.subr.bf16.mxu0 0
        %653 = vmatpush2.bf16.msra.mxu0 0
        %654 = vmatprep.subr.bf16.mxu0 0
        %655 = vmatpush2.bf16.msra.mxu0 0
        %656 = vmatprep.subr.bf16.mxu0 0
        %657 = vmatpush2.bf16.msra.mxu0 0
        %658 = vmatprep.subr.bf16.mxu0 0
        %659 = vmatpush2.bf16.msra.mxu0 0
        %660 = vmatprep.mubr.bf16.mxu0 0
        %661 = vmatmul.mubr.bf16.gmra.mxu0 %v626
        %v662 = vpop.f32.mrf.mxu0
        %v663 = vadd.f32 %v623, %v662
        %v664 = vpop.f32.mrf.mxu0
        %v665 = vpop.f32.mrf.mxu0
        %v666 = vpop.f32.mrf.mxu0
        %667 = vdwg.mxu0
        %v668 = vld [vmem:[#allocation11] sm:$0xff]
        %v669 = vld [vmem:[#allocation11 + $0x8] sm:$0xff]
        %v670 = vld [vmem:[#allocation11 + $0x10] sm:$0xff]
        %v671 = vld [vmem:[#allocation11 + $0x18] sm:$0xff]
        %v672 = vpack.c.bf16 %v551, %v551
        %v673 = vpack.c.bf16 %v669, %v668
        %v674 = vpack.c.bf16 %v671, %v670
        %v675 = vld [vmem:[%s8] sm:$0x1]
        %v677 = vlaneseq
        %v678 = vshrl.u32 %v677, 7
        %v679 = vsub.s32 0, %v678
        %v680 = vrot.slane %v675, %v679
        %v683 = vsel %vm566, %v672, 0
        %685 = vmatprep.subr.bf16.mxu0 0
        %686 = vmatpush1.bf16.msra.mxu0 0
        %687 = vmatprep.subr.bf16.mxu0 0
        %688 = vmatpush1.bf16.msra.mxu0 0
        %689 = vmatprep.subr.bf16.mxu0 0
        %690 = vmatpush1.bf16.msra.mxu0 0
        %691 = vmatprep.subr.bf16.mxu0 0
        %692 = vmatpush1.bf16.msra.mxu0 0
        %693 = vmatprep.subr.bf16.mxu0 0
        %694 = vmatpush1.bf16.msra.mxu0 0
        %695 = vmatprep.subr.bf16.mxu0 0
        %696 = vmatpush1.bf16.msra.mxu0 0
        %697 = vmatprep.subr.bf16.mxu0 0
        %698 = vmatpush1.bf16.msra.mxu0 %v674
        %699 = vmatprep.subr.bf16.mxu0 0
        %700 = vmatpush1.bf16.msra.mxu0 %v673
        %701 = vmatprep.subr.bf16.mxu0 0
        %702 = vmatpush2.bf16.msra.mxu0 0
        %703 = vmatprep.subr.bf16.mxu0 0
        %704 = vmatpush2.bf16.msra.mxu0 0
        %705 = vmatprep.subr.bf16.mxu0 0
        %706 = vmatpush2.bf16.msra.mxu0 0
        %707 = vmatprep.subr.bf16.mxu0 0
        %708 = vmatpush2.bf16.msra.mxu0 0
        %709 = vmatprep.subr.bf16.mxu0 0
        %710 = vmatpush2.bf16.msra.mxu0 0
        %711 = vmatprep.subr.bf16.mxu0 0
        %712 = vmatpush2.bf16.msra.mxu0 0
        %713 = vmatprep.subr.bf16.mxu0 0
        %714 = vmatpush2.bf16.msra.mxu0 0
        %715 = vmatprep.subr.bf16.mxu0 0
        %716 = vmatpush2.bf16.msra.mxu0 0
        %717 = vmatprep.mubr.bf16.mxu0 0
        %718 = vmatmul.mubr.bf16.gmra.mxu0 %v683
        %v719 = vpop.f32.mrf.mxu0
        %v720 = vadd.f32 %v680, %v719
        %v721 = vpop.f32.mrf.mxu0
        %v722 = vpop.f32.mrf.mxu0
        %v723 = vpop.f32.mrf.mxu0
        %724 = vdwg.mxu0
        %v725 = vpack.c.bf16 %v610, %v610
        %v726 = vpack.c.bf16 %v663, %v663
        %vm727 = vcmask 64512
        %v729 = vsel %vm727, %v725, 0
        %v732 = vsel %vm727, %v726, 0
        %734 = vmatprep.subr.bf16.mxu0 0
        %735 = vmatpush1.bf16.xpose.msra.mxu0 0
        %736 = vmatprep.subr.bf16.mxu0 0
        %737 = vmatpush1.bf16.xpose.msra.mxu0 0
        %738 = vmatprep.subr.bf16.mxu0 0
        %739 = vmatpush1.bf16.xpose.msra.mxu0 0
        %740 = vmatprep.subr.bf16.mxu0 0
        %741 = vmatpush1.bf16.xpose.msra.mxu0 0
        %742 = vmatprep.subr.bf16.mxu0 0
        %743 = vmatpush1.bf16.xpose.msra.mxu0 0
        %744 = vmatprep.subr.bf16.mxu0 0
        %745 = vmatpush1.bf16.xpose.msra.mxu0 0
        %746 = vmatprep.subr.bf16.mxu0 0
        %747 = vmatpush1.bf16.xpose.msra.mxu0 0
        %748 = vmatprep.subr.bf16.mxu0 0
        %749 = vmatpush1.bf16.xpose.msra.mxu0 %v732
        %750 = vmatprep.subr.bf16.mxu0 0
        %751 = vmatpush2.bf16.xpose.msra.mxu0 0
        %752 = vmatprep.subr.bf16.mxu0 0
        %753 = vmatpush2.bf16.xpose.msra.mxu0 0
        %754 = vmatprep.subr.bf16.mxu0 0
        %755 = vmatpush2.bf16.xpose.msra.mxu0 0
        %756 = vmatprep.subr.bf16.mxu0 0
        %757 = vmatpush2.bf16.xpose.msra.mxu0 0
        %758 = vmatprep.subr.bf16.mxu0 0
        %759 = vmatpush2.bf16.xpose.msra.mxu0 0
        %760 = vmatprep.subr.bf16.mxu0 0
        %761 = vmatpush2.bf16.xpose.msra.mxu0 0
        %762 = vmatprep.subr.bf16.mxu0 0
        %763 = vmatpush2.bf16.xpose.msra.mxu0 0
        %764 = vmatprep.subr.bf16.mxu0 0
        %765 = vmatpush2.bf16.xpose.msra.mxu0 0
        %766 = vmatprep.mubr.bf16.mxu0 0
        %767 = vmatmul.mubr.bf16.gmra.mxu0 %v729
        %v768 = vpop.f32.mrf.mxu0
        %v769 = vadd.f32 0.0, %v768
        %v770 = vpop.f32.mrf.mxu0
        %v771 = vpop.f32.mrf.mxu0
        %v772 = vpop.f32.mrf.mxu0
        %773 = vdwg.mxu0
        %v774 = vsel %vm727, %v769, -inf
        %775 = vmax.xlane.f32.xlu0 %v774
        %v776 = vpop.xlane.xlu0 %775
        %v777 = vsub.f32 %v769, %v776
        %v778 = vmul.f32 %v777, 1.442695
        %v779 = vpow.pop %v778
        %v780 = vsel %vm727, %v779, 0.0
        %781 = vadd.xlane.f32.xlu0 %v780
        %v782 = vpop.xlane.xlu0 %781
        %v783 = vrcp.pop %v782
        %v784 = vmul.f32 %v779, %v783
        %v785 = vpack.c.bf16 %v784, %v784
        %v786 = vpack.c.bf16 %v720, %v720
        %v788 = vsel %vm727, %v785, 0
        %vm790 = vcmask 1043456
        %v792 = vsel %vm790, %v786, 0
        %794 = vmatprep.subr.bf16.mxu0 0
        %795 = vmatpush1.bf16.msra.mxu0 0
        %796 = vmatprep.subr.bf16.mxu0 0
        %797 = vmatpush1.bf16.msra.mxu0 0
        %798 = vmatprep.subr.bf16.mxu0 0
        %799 = vmatpush1.bf16.msra.mxu0 0
        %800 = vmatprep.subr.bf16.mxu0 0
        %801 = vmatpush1.bf16.msra.mxu0 0
        %802 = vmatprep.subr.bf16.mxu0 0
        %803 = vmatpush1.bf16.msra.mxu0 0
        %804 = vmatprep.subr.bf16.mxu0 0
        %805 = vmatpush1.bf16.msra.mxu0 0
        %806 = vmatprep.subr.bf16.mxu0 0
        %807 = vmatpush1.bf16.msra.mxu0 0
        %808 = vmatprep.subr.bf16.mxu0 0
        %809 = vmatpush1.bf16.msra.mxu0 %v792
        %810 = vmatprep.subr.bf16.mxu0 0
        %811 = vmatpush2.bf16.msra.mxu0 0
        %812 = vmatprep.subr.bf16.mxu0 0
        %813 = vmatpush2.bf16.msra.mxu0 0
        %814 = vmatprep.subr.bf16.mxu0 0
        %815 = vmatpush2.bf16.msra.mxu0 0
        %816 = vmatprep.subr.bf16.mxu0 0
        %817 = vmatpush2.bf16.msra.mxu0 0
        %818 = vmatprep.subr.bf16.mxu0 0
        %819 = vmatpush2.bf16.msra.mxu0 0
        %820 = vmatprep.subr.bf16.mxu0 0
        %821 = vmatpush2.bf16.msra.mxu0 0
        %822 = vmatprep.subr.bf16.mxu0 0
        %823 = vmatpush2.bf16.msra.mxu0 0
        %824 = vmatprep.subr.bf16.mxu0 0
        %825 = vmatpush2.bf16.msra.mxu0 0
        %826 = vmatprep.mubr.bf16.mxu0 0
        %827 = vmatmul.mubr.bf16.gmra.mxu0 %v788
        %v828 = vpop.f32.mrf.mxu0
        %v829 = vadd.f32 0.0, %v828
        %v830 = vpop.f32.mrf.mxu0
        %v831 = vpop.f32.mrf.mxu0
        %v832 = vpop.f32.mrf.mxu0
        %833 = vdwg.mxu0
        %835 = vrot.lane.b32.xlu0 %v725, 120
        %v836 = vpop.permute.xlu0 %835
        %838 = vrot.lane.b32.xlu0 %v726, 120
        %v839 = vpop.permute.xlu0 %838
        %v841 = vsel %vm727, %v836, 0
        %v844 = vsel %vm727, %v839, 0
        %846 = vmatprep.subr.bf16.mxu0 0
        %847 = vmatpush1.bf16.xpose.msra.mxu0 0
        %848 = vmatprep.subr.bf16.mxu0 0
        %849 = vmatpush1.bf16.xpose.msra.mxu0 0
        %850 = vmatprep.subr.bf16.mxu0 0
        %851 = vmatpush1.bf16.xpose.msra.mxu0 0
        %852 = vmatprep.subr.bf16.mxu0 0
        %853 = vmatpush1.bf16.xpose.msra.mxu0 0
        %854 = vmatprep.subr.bf16.mxu0 0
        %855 = vmatpush1.bf16.xpose.msra.mxu0 0
        %856 = vmatprep.subr.bf16.mxu0 0
        %857 = vmatpush1.bf16.xpose.msra.mxu0 0
        %858 = vmatprep.subr.bf16.mxu0 0
        %859 = vmatpush1.bf16.xpose.msra.mxu0 0
        %860 = vmatprep.subr.bf16.mxu0 0
        %861 = vmatpush1.bf16.xpose.msra.mxu0 %v844
        %862 = vmatprep.subr.bf16.mxu0 0
        %863 = vmatpush2.bf16.xpose.msra.mxu0 0
        %864 = vmatprep.subr.bf16.mxu0 0
        %865 = vmatpush2.bf16.xpose.msra.mxu0 0
        %866 = vmatprep.subr.bf16.mxu0 0
        %867 = vmatpush2.bf16.xpose.msra.mxu0 0
        %868 = vmatprep.subr.bf16.mxu0 0
        %869 = vmatpush2.bf16.xpose.msra.mxu0 0
        %870 = vmatprep.subr.bf16.mxu0 0
        %871 = vmatpush2.bf16.xpose.msra.mxu0 0
        %872 = vmatprep.subr.bf16.mxu0 0
        %873 = vmatpush2.bf16.xpose.msra.mxu0 0
        %874 = vmatprep.subr.bf16.mxu0 0
        %875 = vmatpush2.bf16.xpose.msra.mxu0 0
        %876 = vmatprep.subr.bf16.mxu0 0
        %877 = vmatpush2.bf16.xpose.msra.mxu0 0
        %878 = vmatprep.mubr.bf16.mxu0 0
        %879 = vmatmul.mubr.bf16.gmra.mxu0 %v841
        %v880 = vpop.f32.mrf.mxu0
        %v881 = vadd.f32 0.0, %v880
        %v882 = vpop.f32.mrf.mxu0
        %v883 = vpop.f32.mrf.mxu0
        %v884 = vpop.f32.mrf.mxu0
        %885 = vdwg.mxu0
        %v886 = vsel %vm727, %v881, -inf
        %887 = vmax.xlane.f32.xlu0 %v886
        %v888 = vpop.xlane.xlu0 %887
        %v889 = vsub.f32 %v881, %v888
        %v890 = vmul.f32 %v889, 1.442695
        %v891 = vpow.pop %v890
        %v892 = vsel %vm727, %v891, 0.0
        %893 = vadd.xlane.f32.xlu0 %v892
        %v894 = vpop.xlane.xlu0 %893
        %v895 = vrcp.pop %v894
        %v896 = vmul.f32 %v891, %v895
        %v897 = vpack.c.bf16 %v896, %v896
        %899 = vrot.lane.b32.xlu0 %v786, 120
        %v900 = vpop.permute.xlu0 %899
        %v902 = vsel %vm727, %v897, 0
        %v905 = vsel %vm790, %v900, 0
        %907 = vmatprep.subr.bf16.mxu0 0
        %908 = vmatpush1.bf16.msra.mxu0 0
        %909 = vmatprep.subr.bf16.mxu0 0
        %910 = vmatpush1.bf16.msra.mxu0 0
        %911 = vmatprep.subr.bf16.mxu0 0
        %912 = vmatpush1.bf16.msra.mxu0 0
        %913 = vmatprep.subr.bf16.mxu0 0
        %914 = vmatpush1.bf16.msra.mxu0 0
        %915 = vmatprep.subr.bf16.mxu0 0
        %916 = vmatpush1.bf16.msra.mxu0 0
        %917 = vmatprep.subr.bf16.mxu0 0
        %918 = vmatpush1.bf16.msra.mxu0 0
        %919 = vmatprep.subr.bf16.mxu0 0
        %920 = vmatpush1.bf16.msra.mxu0 0
        %921 = vmatprep.subr.bf16.mxu0 0
        %922 = vmatpush1.bf16.msra.mxu0 %v905
        %923 = vmatprep.subr.bf16.mxu0 0
        %924 = vmatpush2.bf16.msra.mxu0 0
        %925 = vmatprep.subr.bf16.mxu0 0
        %926 = vmatpush2.bf16.msra.mxu0 0
        %927 = vmatprep.subr.bf16.mxu0 0
        %928 = vmatpush2.bf16.msra.mxu0 0
        %929 = vmatprep.subr.bf16.mxu0 0
        %930 = vmatpush2.bf16.msra.mxu0 0
        %931 = vmatprep.subr.bf16.mxu0 0
        %932 = vmatpush2.bf16.msra.mxu0 0
        %933 = vmatprep.subr.bf16.mxu0 0
        %934 = vmatpush2.bf16.msra.mxu0 0
        %935 = vmatprep.subr.bf16.mxu0 0
        %936 = vmatpush2.bf16.msra.mxu0 0
        %937 = vmatprep.subr.bf16.mxu0 0
        %938 = vmatpush2.bf16.msra.mxu0 0
        %939 = vmatprep.mubr.bf16.mxu0 0
        %940 = vmatmul.mubr.bf16.gmra.mxu0 %v902
        %v941 = vpop.f32.mrf.mxu0
        %v942 = vadd.f32 0.0, %v941
        %v943 = vpop.f32.mrf.mxu0
        %v944 = vpop.f32.mrf.mxu0
        %v945 = vpop.f32.mrf.mxu0
        %946 = vdwg.mxu0
        %947 = vrot.lane.b32.xlu0 %v725, 112
        %v948 = vpop.permute.xlu0 %947
        %949 = vrot.lane.b32.xlu0 %v726, 112
        %v950 = vpop.permute.xlu0 %949
        %v952 = vsel %vm727, %v948, 0
        %v955 = vsel %vm727, %v950, 0
        %957 = vmatprep.subr.bf16.mxu0 0
        %958 = vmatpush1.bf16.xpose.msra.mxu0 0
        %959 = vmatprep.subr.bf16.mxu0 0
        %960 = vmatpush1.bf16.xpose.msra.mxu0 0
        %961 = vmatprep.subr.bf16.mxu0 0
        %962 = vmatpush1.bf16.xpose.msra.mxu0 0
        %963 = vmatprep.subr.bf16.mxu0 0
        %964 = vmatpush1.bf16.xpose.msra.mxu0 0
        %965 = vmatprep.subr.bf16.mxu0 0
        %966 = vmatpush1.bf16.xpose.msra.mxu0 0
        %967 = vmatprep.subr.bf16.mxu0 0
        %968 = vmatpush1.bf16.xpose.msra.mxu0 0
        %969 = vmatprep.subr.bf16.mxu0 0
        %970 = vmatpush1.bf16.xpose.msra.mxu0 0
        %971 = vmatprep.subr.bf16.mxu0 0
        %972 = vmatpush1.bf16.xpose.msra.mxu0 %v955
        %973 = vmatprep.subr.bf16.mxu0 0
        %974 = vmatpush2.bf16.xpose.msra.mxu0 0
        %975 = vmatprep.subr.bf16.mxu0 0
        %976 = vmatpush2.bf16.xpose.msra.mxu0 0
        %977 = vmatprep.subr.bf16.mxu0 0
        %978 = vmatpush2.bf16.xpose.msra.mxu0 0
        %979 = vmatprep.subr.bf16.mxu0 0
        %980 = vmatpush2.bf16.xpose.msra.mxu0 0
        %981 = vmatprep.subr.bf16.mxu0 0
        %982 = vmatpush2.bf16.xpose.msra.mxu0 0
        %983 = vmatprep.subr.bf16.mxu0 0
        %984 = vmatpush2.bf16.xpose.msra.mxu0 0
        %985 = vmatprep.subr.bf16.mxu0 0
        %986 = vmatpush2.bf16.xpose.msra.mxu0 0
        %987 = vmatprep.subr.bf16.mxu0 0
        %988 = vmatpush2.bf16.xpose.msra.mxu0 0
        %989 = vmatprep.mubr.bf16.mxu0 0
        %990 = vmatmul.mubr.bf16.gmra.mxu0 %v952
        %v991 = vpop.f32.mrf.mxu0
        %v992 = vadd.f32 0.0, %v991
        %v993 = vpop.f32.mrf.mxu0
        %v994 = vpop.f32.mrf.mxu0
        %v995 = vpop.f32.mrf.mxu0
        %996 = vdwg.mxu0
        %v997 = vsel %vm727, %v992, -inf
        %998 = vmax.xlane.f32.xlu0 %v997
        %v999 = vpop.xlane.xlu0 %998
        %v1000 = vsub.f32 %v992, %v999
        %v1001 = vmul.f32 %v1000, 1.442695
        %v1002 = vpow.pop %v1001
        %v1003 = vsel %vm727, %v1002, 0.0
        %1004 = vadd.xlane.f32.xlu0 %v1003
        %v1005 = vpop.xlane.xlu0 %1004
        %v1006 = vrcp.pop %v1005
        %v1007 = vmul.f32 %v1002, %v1006
        %v1008 = vpack.c.bf16 %v1007, %v1007
        %1009 = vrot.lane.b32.xlu0 %v786, 112
        %v1010 = vpop.permute.xlu0 %1009
        %v1012 = vsel %vm727, %v1008, 0
        %v1015 = vsel %vm790, %v1010, 0
        %1017 = vmatprep.subr.bf16.mxu0 0
        %1018 = vmatpush1.bf16.msra.mxu0 0
        %1019 = vmatprep.subr.bf16.mxu0 0
        %1020 = vmatpush1.bf16.msra.mxu0 0
        %1021 = vmatprep.subr.bf16.mxu0 0
        %1022 = vmatpush1.bf16.msra.mxu0 0
        %1023 = vmatprep.subr.bf16.mxu0 0
        %1024 = vmatpush1.bf16.msra.mxu0 0
        %1025 = vmatprep.subr.bf16.mxu0 0
        %1026 = vmatpush1.bf16.msra.mxu0 0
        %1027 = vmatprep.subr.bf16.mxu0 0
        %1028 = vmatpush1.bf16.msra.mxu0 0
        %1029 = vmatprep.subr.bf16.mxu0 0
        %1030 = vmatpush1.bf16.msra.mxu0 0
        %1031 = vmatprep.subr.bf16.mxu0 0
        %1032 = vmatpush1.bf16.msra.mxu0 %v1015
        %1033 = vmatprep.subr.bf16.mxu0 0
        %1034 = vmatpush2.bf16.msra.mxu0 0
        %1035 = vmatprep.subr.bf16.mxu0 0
        %1036 = vmatpush2.bf16.msra.mxu0 0
        %1037 = vmatprep.subr.bf16.mxu0 0
        %1038 = vmatpush2.bf16.msra.mxu0 0
        %1039 = vmatprep.subr.bf16.mxu0 0
        %1040 = vmatpush2.bf16.msra.mxu0 0
        %1041 = vmatprep.subr.bf16.mxu0 0
        %1042 = vmatpush2.bf16.msra.mxu0 0
        %1043 = vmatprep.subr.bf16.mxu0 0
        %1044 = vmatpush2.bf16.msra.mxu0 0
        %1045 = vmatprep.subr.bf16.mxu0 0
        %1046 = vmatpush2.bf16.msra.mxu0 0
        %1047 = vmatprep.subr.bf16.mxu0 0
        %1048 = vmatpush2.bf16.msra.mxu0 0
        %1049 = vmatprep.mubr.bf16.mxu0 0
        %1050 = vmatmul.mubr.bf16.gmra.mxu0 %v1012
        %v1051 = vpop.f32.mrf.mxu0
        %v1052 = vadd.f32 0.0, %v1051
        %v1053 = vpop.f32.mrf.mxu0
        %v1054 = vpop.f32.mrf.mxu0
        %v1055 = vpop.f32.mrf.mxu0
        %1056 = vdwg.mxu0
        %1057 = vrot.lane.b32.xlu0 %v725, 104
        %v1058 = vpop.permute.xlu0 %1057
        %1059 = vrot.lane.b32.xlu0 %v726, 104
        %v1060 = vpop.permute.xlu0 %1059
        %v1062 = vsel %vm727, %v1058, 0
        %v1065 = vsel %vm727, %v1060, 0
        %1067 = vmatprep.subr.bf16.mxu0 0
        %1068 = vmatpush1.bf16.xpose.msra.mxu0 0
        %1069 = vmatprep.subr.bf16.mxu0 0
        %1070 = vmatpush1.bf16.xpose.msra.mxu0 0
        %1071 = vmatprep.subr.bf16.mxu0 0
        %1072 = vmatpush1.bf16.xpose.msra.mxu0 0
        %1073 = vmatprep.subr.bf16.mxu0 0
        %1074 = vmatpush1.bf16.xpose.msra.mxu0 0
        %1075 = vmatprep.subr.bf16.mxu0 0
        %1076 = vmatpush1.bf16.xpose.msra.mxu0 0
        %1077 = vmatprep.subr.bf16.mxu0 0
        %1078 = vmatpush1.bf16.xpose.msra.mxu0 0
        %1079 = vmatprep.subr.bf16.mxu0 0
        %1080 = vmatpush1.bf16.xpose.msra.mxu0 0
        %1081 = vmatprep.subr.bf16.mxu0 0
        %1082 = vmatpush1.bf16.xpose.msra.mxu0 %v1065
        %1083 = vmatprep.subr.bf16.mxu0 0
        %1084 = vmatpush2.bf16.xpose.msra.mxu0 0
        %1085 = vmatprep.subr.bf16.mxu0 0
        %1086 = vmatpush2.bf16.xpose.msra.mxu0 0
        %1087 = vmatprep.subr.bf16.mxu0 0
        %1088 = vmatpush2.bf16.xpose.msra.mxu0 0
        %1089 = vmatprep.subr.bf16.mxu0 0
        %1090 = vmatpush2.bf16.xpose.msra.mxu0 0
        %1091 = vmatprep.subr.bf16.mxu0 0
        %1092 = vmatpush2.bf16.xpose.msra.mxu0 0
        %1093 = vmatprep.subr.bf16.mxu0 0
        %1094 = vmatpush2.bf16.xpose.msra.mxu0 0
        %1095 = vmatprep.subr.bf16.mxu0 0
        %1096 = vmatpush2.bf16.xpose.msra.mxu0 0
        %1097 = vmatprep.subr.bf16.mxu0 0
        %1098 = vmatpush2.bf16.xpose.msra.mxu0 0
        %1099 = vmatprep.mubr.bf16.mxu0 0
        %1100 = vmatmul.mubr.bf16.gmra.mxu0 %v1062
        %v1101 = vpop.f32.mrf.mxu0
        %v1102 = vadd.f32 0.0, %v1101
        %v1103 = vpop.f32.mrf.mxu0
        %v1104 = vpop.f32.mrf.mxu0
        %v1105 = vpop.f32.mrf.mxu0
        %1106 = vdwg.mxu0
        %v1107 = vsel %vm727, %v1102, -inf
        %1108 = vmax.xlane.f32.xlu0 %v1107
        %v1109 = vpop.xlane.xlu0 %1108
        %v1110 = vsub.f32 %v1102, %v1109
        %v1111 = vmul.f32 %v1110, 1.442695
        %v1112 = vpow.pop %v1111
        %v1113 = vsel %vm727, %v1112, 0.0
        %1114 = vadd.xlane.f32.xlu0 %v1113
        %v1115 = vpop.xlane.xlu0 %1114
        %v1116 = vrcp.pop %v1115
        %v1117 = vmul.f32 %v1112, %v1116
        %v1118 = vpack.c.bf16 %v1117, %v1117
        %1119 = vrot.lane.b32.xlu0 %v786, 104
        %v1120 = vpop.permute.xlu0 %1119
        %v1122 = vsel %vm727, %v1118, 0
        %v1125 = vsel %vm790, %v1120, 0
        %1127 = vmatprep.subr.bf16.mxu0 0
        %1128 = vmatpush1.bf16.msra.mxu0 0
        %1129 = vmatprep.subr.bf16.mxu0 0
        %1130 = vmatpush1.bf16.msra.mxu0 0
        %1131 = vmatprep.subr.bf16.mxu0 0
        %1132 = vmatpush1.bf16.msra.mxu0 0
        %1133 = vmatprep.subr.bf16.mxu0 0
        %1134 = vmatpush1.bf16.msra.mxu0 0
        %1135 = vmatprep.subr.bf16.mxu0 0
        %1136 = vmatpush1.bf16.msra.mxu0 0
        %1137 = vmatprep.subr.bf16.mxu0 0
        %1138 = vmatpush1.bf16.msra.mxu0 0
        %1139 = vmatprep.subr.bf16.mxu0 0
        %1140 = vmatpush1.bf16.msra.mxu0 0
        %1141 = vmatprep.subr.bf16.mxu0 0
        %1142 = vmatpush1.bf16.msra.mxu0 %v1125
        %1143 = vmatprep.subr.bf16.mxu0 0
        %1144 = vmatpush2.bf16.msra.mxu0 0
        %1145 = vmatprep.subr.bf16.mxu0 0
        %1146 = vmatpush2.bf16.msra.mxu0 0
        %1147 = vmatprep.subr.bf16.mxu0 0
        %1148 = vmatpush2.bf16.msra.mxu0 0
        %1149 = vmatprep.subr.bf16.mxu0 0
        %1150 = vmatpush2.bf16.msra.mxu0 0
        %1151 = vmatprep.subr.bf16.mxu0 0
        %1152 = vmatpush2.bf16.msra.mxu0 0
        %1153 = vmatprep.subr.bf16.mxu0 0
        %1154 = vmatpush2.bf16.msra.mxu0 0
        %1155 = vmatprep.subr.bf16.mxu0 0
        %1156 = vmatpush2.bf16.msra.mxu0 0
        %1157 = vmatprep.subr.bf16.mxu0 0
        %1158 = vmatpush2.bf16.msra.mxu0 0
        %1159 = vmatprep.mubr.bf16.mxu0 0
        %1160 = vmatmul.mubr.bf16.gmra.mxu0 %v1122
        %v1161 = vpop.f32.mrf.mxu0
        %v1162 = vadd.f32 0.0, %v1161
        %v1163 = vpop.f32.mrf.mxu0
        %v1164 = vpop.f32.mrf.mxu0
        %v1165 = vpop.f32.mrf.mxu0
        %1166 = vdwg.mxu0
        %1168 = vrot.lane.b32.xlu0 %v942, 8
        %v1169 = vpop.permute.xlu0 %1168
        %1172 = vrot.lane.b32.xlu0 %v1052, 16
        %v1173 = vpop.permute.xlu0 %1172
        %1176 = vrot.lane.b32.xlu0 %v1162, 24
        %v1177 = vpop.permute.xlu0 %1176
        %v1179 = vsel %vm727, %v829, %v1169
        %vm1180 = vcmask 130048
        %v1181 = vsel %vm1180, %v1179, %v1173
        %vm1182 = vcmask 195584
        %v1183 = vsel %vm1182, %v1181, %v1177
        %v1184 = vld [vmem:[#allocation13] sm:$0xff]
        %v1185 = vld [vmem:[#allocation13 + $0x8] sm:$0xff]
        %v1186 = vld [vmem:[#allocation13 + $0x10] sm:$0xff]
        %v1187 = vld [vmem:[#allocation13 + $0x18] sm:$0xff]
        %v1188 = vpack.c.bf16 %v1183, %v1183
        %v1189 = vpack.c.bf16 %v1185, %v1184
        %v1190 = vpack.c.bf16 %v1187, %v1186
        %v1191 = vld [vmem:[%s10] sm:$0x1]
        %v1193 = vlaneseq
        %v1194 = vshrl.u32 %v1193, 7
        %v1195 = vsub.s32 0, %v1194
        %v1196 = vrot.slane %v1191, %v1195
        %v1199 = vsel %vm566, %v1188, 0
        %1201 = vmatprep.subr.bf16.mxu0 0
        %1202 = vmatpush1.bf16.msra.mxu0 0
        %1203 = vmatprep.subr.bf16.mxu0 0
        %1204 = vmatpush1.bf16.msra.mxu0 0
        %1205 = vmatprep.subr.bf16.mxu0 0
        %1206 = vmatpush1.bf16.msra.mxu0 0
        %1207 = vmatprep.subr.bf16.mxu0 0
        %1208 = vmatpush1.bf16.msra.mxu0 0
        %1209 = vmatprep.subr.bf16.mxu0 0
        %1210 = vmatpush1.bf16.msra.mxu0 0
        %1211 = vmatprep.subr.bf16.mxu0 0
        %1212 = vmatpush1.bf16.msra.mxu0 0
        %1213 = vmatprep.subr.bf16.mxu0 0
        %1214 = vmatpush1.bf16.msra.mxu0 %v1190
        %1215 = vmatprep.subr.bf16.mxu0 0
        %1216 = vmatpush1.bf16.msra.mxu0 %v1189
        %1217 = vmatprep.subr.bf16.mxu0 0
        %1218 = vmatpush2.bf16.msra.mxu0 0
        %1219 = vmatprep.subr.bf16.mxu0 0
        %1220 = vmatpush2.bf16.msra.mxu0 0
        %1221 = vmatprep.subr.bf16.mxu0 0
        %1222 = vmatpush2.bf16.msra.mxu0 0
        %1223 = vmatprep.subr.bf16.mxu0 0
        %1224 = vmatpush2.bf16.msra.mxu0 0
        %1225 = vmatprep.subr.bf16.mxu0 0
        %1226 = vmatpush2.bf16.msra.mxu0 0
        %1227 = vmatprep.subr.bf16.mxu0 0
        %1228 = vmatpush2.bf16.msra.mxu0 0
        %1229 = vmatprep.subr.bf16.mxu0 0
        %1230 = vmatpush2.bf16.msra.mxu0 0
        %1231 = vmatprep.subr.bf16.mxu0 0
        %1232 = vmatpush2.bf16.msra.mxu0 0
        %1233 = vmatprep.mubr.bf16.mxu0 0
        %1234 = vmatmul.mubr.bf16.gmra.mxu0 %v1199
        %v1235 = vpop.f32.mrf.mxu0
        %v1236 = vadd.f32 %v1196, %v1235
        %v1237 = vpop.f32.mrf.mxu0
        %v1238 = vpop.f32.mrf.mxu0
        %v1239 = vpop.f32.mrf.mxu0
        %1240 = vdwg.mxu0
        %1241 = vst.msk [vmem:[%s547] sm:$0xff] %vm566, %v1236
        %s1242 = sand.u32 %s303, 1
        %s1243 = scalar_lea.sflag [#allocation4], %s1242
        %s1244 = sand.u32 %s303, 1
        %s1245 = smul.addr %s1244, 8
        %s1246 = scalar_lea.vmem [#allocation14], %s1245
        // Predicated region
        $region93: #{tpu_custom_call.1} parent=63 // pred_check
          %p1247 = pneg %p313
        $region94: #{tpu_custom_call.1} parent=63 // pred_check_branch
          %1249 = sbr.rel (%p1247) target = $region96
        $region95: #{tpu_custom_call.1} parent=63 // pred_region
          %s1251 = ssub.s32 128, 128
          %1252 = vsyncadd %s1243, %s1251
          %s1253 = sadd.s32 %s38, %s37
          %s1254 = smul.addr %s1253, 128
          %s1255 = scalar_lea.hbm %s11, %s1254
          %s1257 = sshll.u32 %s1246, 4
          %s1258 = int_to_ptr.vmem [resolvable:$true] %s1257
          %1260 = dma.vmem_to_hbm [thread:$0]  %s1258, 128, %s1255, %s1243
        $region96: #{tpu_custom_call.1} parent=63 // pred_fallthru
          _
      $region64: #{tpu_custom_call.1} parent=5 // pred_fallthru
        _
      %p1261 = scmp.le.s32.totalorder 2, %s28
      // Predicated region
      $region97: #{tpu_custom_call.1} parent=5 // pred_check
        %p1262 = pneg %p1261
      $region98: #{tpu_custom_call.1} parent=5 // pred_check_branch
        %1264 = sbr.rel (%p1262) target = $region100
      $region99: #{tpu_custom_call.1} parent=5 // pred_region
        %s1265 = ssub.s32 %s28, 2
        // Predicated region
        $region101: #{tpu_custom_call.1} parent=99 // pred_check
          %p1266 = pneg %p319
        $region102: #{tpu_custom_call.1} parent=99 // pred_check_branch
          %1268 = sbr.rel (%p1266) target = $region104
        $region103: #{tpu_custom_call.1} parent=99 // pred_region
          %s1269 = sand.u32 %s304, 1
          %s1270 = scalar_lea.sflag [#allocation4], %s1269
          %s1271 = sand.u32 %s304, 1
          %s1272 = smul.addr %s1271, 8
          %s1273 = scalar_lea.vmem [#allocation14], %s1272
          %1274 = dma.done %s1270, 128
        $region104: #{tpu_custom_call.1} parent=99 // pred_fallthru
          _
      $region100: #{tpu_custom_call.1} parent=5 // pred_fallthru
        _
    $region6: #{tpu_custom_call.1} parent=1 // loop_footer
      %s32 = sadd.s32 1, %s28
    $region7: #{tpu_custom_call.1} parent=1 // loop_footer_branch
      %27 = sbr.rel target = $region3
    $region8: #{tpu_custom_call.1} parent=1 // loop_exit
      _
    %1275 = vsyncpa [#allocation3], 1
    %s1276 = scalar_lea.sflag [#allocation3], 1
    %1277 = vsyncpa %s1276, 1
    %1278 = vsyncpa [#allocation6], 1
    %s1279 = scalar_lea.sflag [#allocation6], 1
    %1280 = vsyncpa %s1279, 1
    %1281 = vsyncpa [#allocation9], 1
    %1282 = vsyncpa [#allocation12], 1
    %1283 = vsyncpa [#allocation4], 1
    %s1284 = scalar_lea.sflag [#allocation4], 1
    %1285 = vsyncpa %s1284, 1

</llo_original>
